<compile_context>
chip_gen: v7x
topology: tpu7x:2x2x1
jax: 0.10.0
libtpu: 0.0.40
codegen_flags: <defaults>
</compile_context>

<pallas_src>
import functools

import jax
import jax.numpy as jnp
from jax import lax
from jax.experimental import pallas as pl
from jax.experimental.pallas import tpu as pltpu

BN_EPS = 1e-5


# ------------------------------ Pallas kernel --------------------------------

def _aggregator_kernel(feat_ref, mask_ref, pw_w_ref, pw_b_ref, dw_w_ref,
                       sc_w_ref, dw_b_ref, fin_w_ref, fin_b_ref, o_ref,
                       *, num_blocks, NBC, K, pad, Wp, LW):
    # Layout (one grid step = NB batch items packed on sublanes):
    #   feat_ref: (1, NBC, LW)  NBC = NB*C rows (batch-major, channel-minor);
    #                           zero-padded spatial grid flattened on lanes.
    #   mask_ref: (1, LW)       1.0 at valid (non-padding) pixel lanes.
    #   weights:  BN + conv biases folded in; stored as sublane columns so
    #             every read below is a plain (NBC, 1) load.
    feat = feat_ref[0]                                     # (NBC, LW) value
    # Hoist the sublane broadcast of the lane mask once (reused everywhere).
    mask = jnp.broadcast_to(mask_ref[...], (NBC, LW))

    def channel_mix(x, wcols, bias):
        # 1x1 conv over the NB-packed batch (block-diagonal weight) as
        # unrolled VPU broadcast-FMAs: y[p,:] = sum_r Wbig[p,r]*x[r,:] + b[p].
        y = jnp.broadcast_to(bias, (NBC, LW))
        for r in range(NBC):
            y = y + wcols[r] * x[r:r + 1, :]
        return y

    # Static lane shifts of the KxK taps on the flattened padded grid.
    shifts = [(kh - pad) * Wp + (kw - pad)
              for kh in range(K) for kw in range(K)]

    for blk in range(num_blocks):
        # ---- point_wise + bn_point + relu_point (folded) ---------------------
        x = jnp.maximum(channel_mix(feat, pw_w_ref[blk], pw_b_ref[blk]), 0.0)
        x = x * mask                     # emulate the depth-wise zero padding

        # ---- depth_wise(x) + short_cut(feat) + bn_depth + relu_depth ---------
        # Full-LW accumulation with pltpu.roll: every op stays lane-dense.
        # Wrapped lanes only ever land in the masked margins.
        dww = dw_w_ref[blk]                                # (K*K, NBC, 1)
        scw = sc_w_ref[blk]                                # (K*K, NBC, 1)
        acc = jnp.broadcast_to(dw_b_ref[blk], (NBC, LW))   # folded bias
        for t, sh in enumerate(shifts):
            if sh == 0:
                xs, fs = x, feat
            else:
                xs = pltpu.roll(x, shift=(-sh) % LW, axis=1)
                fs = pltpu.roll(feat, shift=(-sh) % LW, axis=1)
            acc = acc + xs * dww[t] + fs * scw[t]
        # Activations stay live in registers between blocks (no scratch).
        feat = jnp.maximum(acc, 0.0) * mask

    # ---- final point_wise + bn + relu (folded) -------------------------------
    out = jnp.maximum(channel_mix(feat, fin_w_ref[...], fin_b_ref[...]), 0.0)
    o_ref[0] = out * mask


# ------------------------------ Pallas wrapper --------------------------------

def aggregator_forward_pallas(x_nchw, block_params, final_params, settings):
    N, C, H, W = x_nchw.shape
    K = settings[0]["kernel_size"]
    pad = settings[0]["padding"]
    num_blocks = len(settings)
    for st in settings:
        assert st["in_channel"] == C and st["out_channel"] == C
        assert st["kernel_size"] == K and st["padding"] == pad
        assert st["stride"] == 1          # TODO(synk): stride > 1 unsupported
    assert 2 * pad == K - 1               # "same" conv: H, W preserved per block

    Hp, Wp = H + 2 * pad, W + 2 * pad
    L = Hp * Wp
    doff = pad * (Wp + 1)                 # |most negative tap lane-shift|
    rmargin = (K - 1 - pad) * (Wp + 1)    # most positive tap lane-shift
    LW = -(-(doff + L + rmargin) // 128) * 128   # lane-dense, multiple of 128

    # ---- batch -> sublane packing so f32 vregs (8 sublanes) are full at C=4
    nb_max = max(1, 8 // C)
    NB = 1
    for d in range(min(N, nb_max), 0, -1):
        if N % d == 0:
            NB = d
            break
    NBC = NB * C
    G = N // NB

    # ---- input layout: (G, NBC, LW), padded grid flattened at lane offset doff
    xpad = jnp.pad(x_nchw.astype(jnp.float32),
                   ((0, 0), (0, 0), (pad, pad), (pad, pad)))
    xin = jnp.pad(xpad.reshape(N, C, L),
                  ((0, 0), (0, 0), (doff, LW - doff - L)))
    xin = xin.reshape(G, NBC, LW)

    # ---- validity mask (single row; broadcast across sublanes in-kernel)
    rows = jnp.arange(Hp)
    cols = jnp.arange(Wp)
    valid = (((rows >= pad) & (rows < pad + H))[:, None]
             & ((cols >= pad) & (cols < pad + W))[None, :])
    mask = jnp.pad(valid.astype(jnp.float32).reshape(1, L),
                   ((0, 0), (doff, LW - doff - L)))

    # ---- fold eval-mode BN (+ conv biases) into weights / per-channel shifts,
    #      pre-laid out as sublane columns tiled over the NB packed batch items
    def fold(gamma, beta, mean, var, bias):
        s = gamma / jnp.sqrt(var + BN_EPS)
        return s, beta + (bias - mean) * s

    eye_nb = jnp.eye(NB, dtype=jnp.float32)

    def pw_layout(w2d):                   # (C_out, C_in) -> (NBC, NBC, 1) cols
        return jnp.kron(eye_nb, w2d).T[:, :, None]

    def col_layout(v1d):                  # (C,) -> (NBC, 1)
        return jnp.tile(v1d, NB)[:, None]

    def tap_layout(w2d):                  # (C, K*K) -> (K*K, NBC, 1)
        return jnp.tile(w2d, (NB, 1)).T[:, :, None]

    pw_w, pw_b, dw_w, sc_w, dw_b = [], [], [], [], []
    for prm in block_params:
        s1, b1 = fold(prm["bnp_g"], prm["bnp_b"], prm["bnp_m"], prm["bnp_v"],
                      prm["pw_b"])
        pw_w.append(pw_layout(prm["pw_w"][:, :, 0, 0] * s1[:, None]))
        pw_b.append(col_layout(b1))
        s2, b2 = fold(prm["bnd_g"], prm["bnd_b"], prm["bnd_m"], prm["bnd_v"],
                      prm["dw_b"] + prm["sc_b"])
        dw_w.append(tap_layout(prm["dw_w"][:, 0].reshape(C, K * K) * s2[:, None]))
        sc_w.append(tap_layout(prm["sc_w"][:, 0].reshape(C, K * K) * s2[:, None]))
        dw_b.append(col_layout(b2))
    pw_w = jnp.stack(pw_w)                # (nb, NBC, NBC, 1)
    pw_b = jnp.stack(pw_b)                # (nb, NBC, 1)
    dw_w = jnp.stack(dw_w)                # (nb, K*K, NBC, 1)
    sc_w = jnp.stack(sc_w)                # (nb, K*K, NBC, 1)
    dw_b = jnp.stack(dw_b)                # (nb, NBC, 1)
    sf, bf = fold(final_params["bn_g"], final_params["bn_b"],
                  final_params["bn_m"], final_params["bn_v"],
                  final_params["pw_b"])
    fin_w = pw_layout(final_params["pw_w"][:, :, 0, 0] * sf[:, None])
    fin_b = col_layout(bf)

    kern = functools.partial(
        _aggregator_kernel, num_blocks=num_blocks, NBC=NBC, K=K, pad=pad,
        Wp=Wp, LW=LW)

    def whole(a):
        nd = a.ndim
        return pl.BlockSpec(a.shape, lambda g, _nd=nd: (0,) * _nd)

    out_full = pl.pallas_call(
        kern,
        out_shape=jax.ShapeDtypeStruct((G, NBC, LW), jnp.float32),
        grid=(G,),
        in_specs=[
            pl.BlockSpec((1, NBC, LW), lambda g: (g, 0, 0)),   # activations
            whole(mask),
            whole(pw_w), whole(pw_b),
            whole(dw_w), whole(sc_w), whole(dw_b),
            whole(fin_w), whole(fin_b),
        ],
        out_specs=pl.BlockSpec((1, NBC, LW), lambda g: (g, 0, 0)),
        compiler_params=pltpu.CompilerParams(
            dimension_semantics=("parallel",)),
    )(xin, mask, pw_w, pw_b, dw_w, sc_w, dw_b, fin_w, fin_b)

    # strip margins / padding ring on the host (layout plumbing, not compute)
    return (out_full.reshape(N, C, LW)[:, :, doff:doff + L]
            .reshape(N, C, Hp, Wp)[:, :, pad:pad + H, pad:pad + W])


# ------------------------------ parameter setup -------------------------------

def init_block_params(key, C, K):
    ks = jax.random.split(key, 16)
    n = lambda k, s, sc=0.2: sc * jax.random.normal(k, s, jnp.float32)
    return dict(
        pw_w=n(ks[0], (C, C, 1, 1)), pw_b=n(ks[1], (C,), 0.1),
        dw_w=n(ks[2], (C, 1, K, K)), dw_b=n(ks[3], (C,), 0.1),
        sc_w=n(ks[4], (C, 1, K, K)), sc_b=n(ks[5], (C,), 0.1),
        bnp_g=1.0 + n(ks[6], (C,), 0.1), bnp_b=n(ks[7], (C,), 0.1),
        bnp_m=n(ks[8], (C,), 0.05),
        bnp_v=1.0 + 0.1 * jax.random.uniform(ks[9], (C,), jnp.float32),
        bnd_g=1.0 + n(ks[10], (C,), 0.1), bnd_b=n(ks[11], (C,), 0.1),
        bnd_m=n(ks[12], (C,), 0.05),
        bnd_v=1.0 + 0.1 * jax.random.uniform(ks[13], (C,), jnp.float32),
    )


def init_final_params(key, C):
    ks = jax.random.split(key, 8)
    n = lambda k, s, sc=0.2: sc * jax.random.normal(k, s, jnp.float32)
    return dict(
        pw_w=n(ks[0], (C, C, 1, 1)), pw_b=n(ks[1], (C,), 0.1),
        bn_g=1.0 + n(ks[2], (C,), 0.1), bn_b=n(ks[3], (C,), 0.1),
        bn_m=n(ks[4], (C,), 0.05),
        bn_v=1.0 + 0.1 * jax.random.uniform(ks[5], (C,), jnp.float32),
    )


# ------------------------------ pure-JAX reference ----------------------------

def _conv2d(x, w, b, stride, pad, groups):
    out = lax.conv_general_dilated(
        x, w, window_strides=(stride, stride),
        padding=((pad, pad), (pad, pad)),
        dimension_numbers=("NCHW", "OIHW", "NCHW"),
        feature_group_count=groups, precision=lax.Precision.HIGHEST)
    return out + b[None, :, None, None]


def _bn_relu(x, g, bt, m, v):
    s = (g / jnp.sqrt(v + BN_EPS))[None, :, None, None]
    return jnp.maximum((x - m[None, :, None, None]) * s
                       + bt[None, :, None, None], 0.0)


def block_forward_ref(feat, p, K, stride, pad):
    C = feat.shape[1]
    x = _bn_relu(_conv2d(feat, p["pw_w"], p["pw_b"], 1, 0, 1),
                 p["bnp_g"], p["bnp_b"], p["bnp_m"], p["bnp_v"])
    y = (_conv2d(x, p["dw_w"], p["dw_b"], stride, pad, C)
         + _conv2d(feat, p["sc_w"], p["sc_b"], stride, pad, C))
    return _bn_relu(y, p["bnd_g"], p["bnd_b"], p["bnd_m"], p["bnd_v"])


def aggregator_forward_ref(x, block_params, final_params, settings):
    feat = x
    for p, st in zip(block_params, settings):
        feat = block_forward_ref(feat, p, st["kernel_size"], st["stride"],
                                 st["padding"])
    y = _conv2d(feat, final_params["pw_w"], final_params["pw_b"], 1, 0, 1)
    return _bn_relu(y, final_params["bn_g"], final_params["bn_b"],
                    final_params["bn_m"], final_params["bn_v"])


# ------------------------------------ main ------------------------------------

if __name__ == "__main__":
    # in_channel must equal out_channel for the PyTorch module to run
    # (depth_wise expects in_channel inputs but receives point_wise output).
    settings = [
        dict(in_channel=4, out_channel=4, kernel_size=3, stride=1, padding=1),
        dict(in_channel=4, out_channel=4, kernel_size=3, stride=1, padding=1),
    ]
    C = settings[-1]["out_channel"]

    root = jax.random.PRNGKey(0)
    k_in, k_fin, *k_blocks = jax.random.split(root, 2 + len(settings))
    block_params = [init_block_params(kb, st["in_channel"], st["kernel_size"])
                    for kb, st in zip(k_blocks, settings)]
    final_params = init_final_params(k_fin, C)

    x = jax.random.normal(k_in, (2, 4, 16, 16), jnp.float32)   # NCHW, like PyTorch

    fwd = jax.jit(lambda inp: aggregator_forward_pallas(
        inp, block_params, final_params, settings))
    out = fwd(x)
    jax.block_until_ready(out)

    ref = aggregator_forward_ref(x, block_params, final_params, settings)
    assert out.shape == ref.shape == (2, 4, 16, 16)
    max_err = float(jnp.max(jnp.abs(out - ref)))
    assert jnp.allclose(out, ref, atol=1e-4, rtol=1e-4), (
        f"Pallas output mismatch vs pure-JAX reference (max abs err {max_err})")

    print("KERNEL_OK")
</pallas_src>

<mosaic_0001>
module attributes {stable_mosaic.version = 11 : i64} {
  func.func @_aggregator_kernel(%arg0: i32, %arg1: memref<1x8x384xf32, #tpu.memory_space<vmem>>, %arg2: memref<1x384xf32, #tpu.memory_space<vmem>>, %arg3: memref<2x8x8x1xf32, #tpu.memory_space<vmem>>, %arg4: memref<2x8x1xf32, #tpu.memory_space<vmem>>, %arg5: memref<2x9x8x1xf32, #tpu.memory_space<vmem>>, %arg6: memref<2x9x8x1xf32, #tpu.memory_space<vmem>>, %arg7: memref<2x8x1xf32, #tpu.memory_space<vmem>>, %arg8: memref<8x8x1xf32, #tpu.memory_space<vmem>>, %arg9: memref<8x1xf32, #tpu.memory_space<vmem>>, %arg10: memref<1x8x384xf32, #tpu.memory_space<vmem>>) attributes {dimension_semantics = [#tpu.dimension_semantics<parallel>], iteration_bounds = array<i64: 1>, scalar_prefetch = 0 : i64, scratch_operands = 0 : i64, tpu.core_type = #tpu.core_type<tc>, window_params = [{transform_indices = @transform_0, window_bounds = array<i64: 1, 8, 384>}, {pipeline_mode = #tpu.pipeline_mode<synchronous>, transform_indices = @transform_1, window_bounds = array<i64: 1, 384>}, {pipeline_mode = #tpu.pipeline_mode<synchronous>, transform_indices = @transform_2, window_bounds = array<i64: 2, 8, 8, 1>}, {pipeline_mode = #tpu.pipeline_mode<synchronous>, transform_indices = @transform_3, window_bounds = array<i64: 2, 8, 1>}, {pipeline_mode = #tpu.pipeline_mode<synchronous>, transform_indices = @transform_4, window_bounds = array<i64: 2, 9, 8, 1>}, {pipeline_mode = #tpu.pipeline_mode<synchronous>, transform_indices = @transform_5, window_bounds = array<i64: 2, 9, 8, 1>}, {pipeline_mode = #tpu.pipeline_mode<synchronous>, transform_indices = @transform_6, window_bounds = array<i64: 2, 8, 1>}, {pipeline_mode = #tpu.pipeline_mode<synchronous>, transform_indices = @transform_7, window_bounds = array<i64: 8, 8, 1>}, {pipeline_mode = #tpu.pipeline_mode<synchronous>, transform_indices = @transform_8, window_bounds = array<i64: 8, 1>}, {transform_indices = @transform_9, window_bounds = array<i64: 1, 8, 384>}]} {
    %c0 = arith.constant 0 : index
    %c0_0 = arith.constant 0 : index
    %c0_1 = arith.constant 0 : index
    %0 = vector.load %arg1[%c0, %c0_0, %c0_1] : memref<1x8x384xf32, #tpu.memory_space<vmem>>, vector<1x8x384xf32>
    %1 = vector.shape_cast %0 : vector<1x8x384xf32> to vector<8x384xf32>
    %c0_2 = arith.constant 0 : index
    %c0_3 = arith.constant 0 : index
    %2 = vector.load %arg2[%c0_2, %c0_3] : memref<1x384xf32, #tpu.memory_space<vmem>>, vector<1x384xf32>
    %3 = vector.shape_cast %2 : vector<1x384xf32> to vector<1x384xf32>
    %4 = vector.broadcast %3 : vector<1x384xf32> to vector<8x384xf32>
    %c0_4 = arith.constant 0 : index
    %c0_5 = arith.constant 0 : index
    %c0_6 = arith.constant 0 : index
    %c0_7 = arith.constant 0 : index
    %5 = vector.load %arg3[%c0_4, %c0_5, %c0_6, %c0_7] : memref<2x8x8x1xf32, #tpu.memory_space<vmem>>, vector<1x8x8x1xf32>
    %6 = vector.shape_cast %5 : vector<1x8x8x1xf32> to vector<8x8x1xf32>
    %c0_8 = arith.constant 0 : index
    %c0_9 = arith.constant 0 : index
    %c0_10 = arith.constant 0 : index
    %7 = vector.load %arg4[%c0_8, %c0_9, %c0_10] : memref<2x8x1xf32, #tpu.memory_space<vmem>>, vector<1x8x1xf32>
    %8 = vector.shape_cast %7 : vector<1x8x1xf32> to vector<8x1xf32>
    %9 = vector.shape_cast %8 : vector<8x1xf32> to vector<8x1xf32>
    %10 = vector.broadcast %9 : vector<8x1xf32> to vector<8x384xf32>
    %11 = vector.extract_strided_slice %6 {offsets = [0, 0, 0], sizes = [1, 8, 1], strides = [1, 1, 1]} : vector<8x8x1xf32> to vector<1x8x1xf32>
    %12 = vector.shape_cast %11 : vector<1x8x1xf32> to vector<8x1xf32>
    %13 = vector.extract_strided_slice %1 {offsets = [0, 0], sizes = [1, 384], strides = [1, 1]} : vector<8x384xf32> to vector<1x384xf32>
    %14 = vector.broadcast %12 : vector<8x1xf32> to vector<8x384xf32>
    %15 = vector.broadcast %13 : vector<1x384xf32> to vector<8x384xf32>
    %16 = arith.mulf %14, %15 : vector<8x384xf32>
    %17 = arith.addf %10, %16 : vector<8x384xf32>
    %18 = vector.extract_strided_slice %6 {offsets = [1, 0, 0], sizes = [1, 8, 1], strides = [1, 1, 1]} : vector<8x8x1xf32> to vector<1x8x1xf32>
    %19 = vector.shape_cast %18 : vector<1x8x1xf32> to vector<8x1xf32>
    %20 = vector.extract_strided_slice %1 {offsets = [1, 0], sizes = [1, 384], strides = [1, 1]} : vector<8x384xf32> to vector<1x384xf32>
    %21 = vector.broadcast %19 : vector<8x1xf32> to vector<8x384xf32>
    %22 = vector.broadcast %20 : vector<1x384xf32> to vector<8x384xf32>
    %23 = arith.mulf %21, %22 : vector<8x384xf32>
    %24 = arith.addf %17, %23 : vector<8x384xf32>
    %25 = vector.extract_strided_slice %6 {offsets = [2, 0, 0], sizes = [1, 8, 1], strides = [1, 1, 1]} : vector<8x8x1xf32> to vector<1x8x1xf32>
    %26 = vector.shape_cast %25 : vector<1x8x1xf32> to vector<8x1xf32>
    %27 = vector.extract_strided_slice %1 {offsets = [2, 0], sizes = [1, 384], strides = [1, 1]} : vector<8x384xf32> to vector<1x384xf32>
    %28 = vector.broadcast %26 : vector<8x1xf32> to vector<8x384xf32>
    %29 = vector.broadcast %27 : vector<1x384xf32> to vector<8x384xf32>
    %30 = arith.mulf %28, %29 : vector<8x384xf32>
    %31 = arith.addf %24, %30 : vector<8x384xf32>
    %32 = vector.extract_strided_slice %6 {offsets = [3, 0, 0], sizes = [1, 8, 1], strides = [1, 1, 1]} : vector<8x8x1xf32> to vector<1x8x1xf32>
    %33 = vector.shape_cast %32 : vector<1x8x1xf32> to vector<8x1xf32>
    %34 = vector.extract_strided_slice %1 {offsets = [3, 0], sizes = [1, 384], strides = [1, 1]} : vector<8x384xf32> to vector<1x384xf32>
    %35 = vector.broadcast %33 : vector<8x1xf32> to vector<8x384xf32>
    %36 = vector.broadcast %34 : vector<1x384xf32> to vector<8x384xf32>
    %37 = arith.mulf %35, %36 : vector<8x384xf32>
    %38 = arith.addf %31, %37 : vector<8x384xf32>
    %39 = vector.extract_strided_slice %6 {offsets = [4, 0, 0], sizes = [1, 8, 1], strides = [1, 1, 1]} : vector<8x8x1xf32> to vector<1x8x1xf32>
    %40 = vector.shape_cast %39 : vector<1x8x1xf32> to vector<8x1xf32>
    %41 = vector.extract_strided_slice %1 {offsets = [4, 0], sizes = [1, 384], strides = [1, 1]} : vector<8x384xf32> to vector<1x384xf32>
    %42 = vector.broadcast %40 : vector<8x1xf32> to vector<8x384xf32>
    %43 = vector.broadcast %41 : vector<1x384xf32> to vector<8x384xf32>
    %44 = arith.mulf %42, %43 : vector<8x384xf32>
    %45 = arith.addf %38, %44 : vector<8x384xf32>
    %46 = vector.extract_strided_slice %6 {offsets = [5, 0, 0], sizes = [1, 8, 1], strides = [1, 1, 1]} : vector<8x8x1xf32> to vector<1x8x1xf32>
    %47 = vector.shape_cast %46 : vector<1x8x1xf32> to vector<8x1xf32>
    %48 = vector.extract_strided_slice %1 {offsets = [5, 0], sizes = [1, 384], strides = [1, 1]} : vector<8x384xf32> to vector<1x384xf32>
    %49 = vector.broadcast %47 : vector<8x1xf32> to vector<8x384xf32>
    %50 = vector.broadcast %48 : vector<1x384xf32> to vector<8x384xf32>
    %51 = arith.mulf %49, %50 : vector<8x384xf32>
    %52 = arith.addf %45, %51 : vector<8x384xf32>
    %53 = vector.extract_strided_slice %6 {offsets = [6, 0, 0], sizes = [1, 8, 1], strides = [1, 1, 1]} : vector<8x8x1xf32> to vector<1x8x1xf32>
    %54 = vector.shape_cast %53 : vector<1x8x1xf32> to vector<8x1xf32>
    %55 = vector.extract_strided_slice %1 {offsets = [6, 0], sizes = [1, 384], strides = [1, 1]} : vector<8x384xf32> to vector<1x384xf32>
    %56 = vector.broadcast %54 : vector<8x1xf32> to vector<8x384xf32>
    %57 = vector.broadcast %55 : vector<1x384xf32> to vector<8x384xf32>
    %58 = arith.mulf %56, %57 : vector<8x384xf32>
    %59 = arith.addf %52, %58 : vector<8x384xf32>
    %60 = vector.extract_strided_slice %6 {offsets = [7, 0, 0], sizes = [1, 8, 1], strides = [1, 1, 1]} : vector<8x8x1xf32> to vector<1x8x1xf32>
    %61 = vector.shape_cast %60 : vector<1x8x1xf32> to vector<8x1xf32>
    %62 = vector.extract_strided_slice %1 {offsets = [7, 0], sizes = [1, 384], strides = [1, 1]} : vector<8x384xf32> to vector<1x384xf32>
    %63 = vector.broadcast %61 : vector<8x1xf32> to vector<8x384xf32>
    %64 = vector.broadcast %62 : vector<1x384xf32> to vector<8x384xf32>
    %65 = arith.mulf %63, %64 : vector<8x384xf32>
    %66 = arith.addf %59, %65 : vector<8x384xf32>
    %cst = arith.constant 0.000000e+00 : f32
    %67 = vector.broadcast %cst : f32 to vector<8x384xf32>
    %68 = arith.maximumf %66, %67 : vector<8x384xf32>
    %69 = arith.mulf %68, %4 : vector<8x384xf32>
    %c0_11 = arith.constant 0 : index
    %c0_12 = arith.constant 0 : index
    %c0_13 = arith.constant 0 : index
    %c0_14 = arith.constant 0 : index
    %70 = vector.load %arg5[%c0_11, %c0_12, %c0_13, %c0_14] : memref<2x9x8x1xf32, #tpu.memory_space<vmem>>, vector<1x9x8x1xf32>
    %71 = vector.shape_cast %70 : vector<1x9x8x1xf32> to vector<9x8x1xf32>
    %c0_15 = arith.constant 0 : index
    %c0_16 = arith.constant 0 : index
    %c0_17 = arith.constant 0 : index
    %c0_18 = arith.constant 0 : index
    %72 = vector.load %arg6[%c0_15, %c0_16, %c0_17, %c0_18] : memref<2x9x8x1xf32, #tpu.memory_space<vmem>>, vector<1x9x8x1xf32>
    %73 = vector.shape_cast %72 : vector<1x9x8x1xf32> to vector<9x8x1xf32>
    %c0_19 = arith.constant 0 : index
    %c0_20 = arith.constant 0 : index
    %c0_21 = arith.constant 0 : index
    %74 = vector.load %arg7[%c0_19, %c0_20, %c0_21] : memref<2x8x1xf32, #tpu.memory_space<vmem>>, vector<1x8x1xf32>
    %75 = vector.shape_cast %74 : vector<1x8x1xf32> to vector<8x1xf32>
    %76 = vector.shape_cast %75 : vector<8x1xf32> to vector<8x1xf32>
    %77 = vector.broadcast %76 : vector<8x1xf32> to vector<8x384xf32>
    %c19_i32 = arith.constant 19 : i32
    %78 = tpu.dynamic_rotate %69 by %c19_i32 dim 1 : vector<8x384xf32>, i32 -> vector<8x384xf32>
    %c19_i32_22 = arith.constant 19 : i32
    %79 = tpu.dynamic_rotate %1 by %c19_i32_22 dim 1 : vector<8x384xf32>, i32 -> vector<8x384xf32>
    %80 = vector.extract_strided_slice %71 {offsets = [0, 0, 0], sizes = [1, 8, 1], strides = [1, 1, 1]} : vector<9x8x1xf32> to vector<1x8x1xf32>
    %81 = vector.shape_cast %80 : vector<1x8x1xf32> to vector<8x1xf32>
    %82 = vector.broadcast %81 : vector<8x1xf32> to vector<8x384xf32>
    %83 = arith.mulf %78, %82 : vector<8x384xf32>
    %84 = arith.addf %77, %83 : vector<8x384xf32>
    %85 = vector.extract_strided_slice %73 {offsets = [0, 0, 0], sizes = [1, 8, 1], strides = [1, 1, 1]} : vector<9x8x1xf32> to vector<1x8x1xf32>
    %86 = vector.shape_cast %85 : vector<1x8x1xf32> to vector<8x1xf32>
    %87 = vector.broadcast %86 : vector<8x1xf32> to vector<8x384xf32>
    %88 = arith.mulf %79, %87 : vector<8x384xf32>
    %89 = arith.addf %84, %88 : vector<8x384xf32>
    %c18_i32 = arith.constant 18 : i32
    %90 = tpu.dynamic_rotate %69 by %c18_i32 dim 1 : vector<8x384xf32>, i32 -> vector<8x384xf32>
    %c18_i32_23 = arith.constant 18 : i32
    %91 = tpu.dynamic_rotate %1 by %c18_i32_23 dim 1 : vector<8x384xf32>, i32 -> vector<8x384xf32>
    %92 = vector.extract_strided_slice %71 {offsets = [1, 0, 0], sizes = [1, 8, 1], strides = [1, 1, 1]} : vector<9x8x1xf32> to vector<1x8x1xf32>
    %93 = vector.shape_cast %92 : vector<1x8x1xf32> to vector<8x1xf32>
    %94 = vector.broadcast %93 : vector<8x1xf32> to vector<8x384xf32>
    %95 = arith.mulf %90, %94 : vector<8x384xf32>
    %96 = arith.addf %89, %95 : vector<8x384xf32>
    %97 = vector.extract_strided_slice %73 {offsets = [1, 0, 0], sizes = [1, 8, 1], strides = [1, 1, 1]} : vector<9x8x1xf32> to vector<1x8x1xf32>
    %98 = vector.shape_cast %97 : vector<1x8x1xf32> to vector<8x1xf32>
    %99 = vector.broadcast %98 : vector<8x1xf32> to vector<8x384xf32>
    %100 = arith.mulf %91, %99 : vector<8x384xf32>
    %101 = arith.addf %96, %100 : vector<8x384xf32>
    %c17_i32 = arith.constant 17 : i32
    %102 = tpu.dynamic_rotate %69 by %c17_i32 dim 1 : vector<8x384xf32>, i32 -> vector<8x384xf32>
    %c17_i32_24 = arith.constant 17 : i32
    %103 = tpu.dynamic_rotate %1 by %c17_i32_24 dim 1 : vector<8x384xf32>, i32 -> vector<8x384xf32>
    %104 = vector.extract_strided_slice %71 {offsets = [2, 0, 0], sizes = [1, 8, 1], strides = [1, 1, 1]} : vector<9x8x1xf32> to vector<1x8x1xf32>
    %105 = vector.shape_cast %104 : vector<1x8x1xf32> to vector<8x1xf32>
    %106 = vector.broadcast %105 : vector<8x1xf32> to vector<8x384xf32>
    %107 = arith.mulf %102, %106 : vector<8x384xf32>
    %108 = arith.addf %101, %107 : vector<8x384xf32>
    %109 = vector.extract_strided_slice %73 {offsets = [2, 0, 0], sizes = [1, 8, 1], strides = [1, 1, 1]} : vector<9x8x1xf32> to vector<1x8x1xf32>
    %110 = vector.shape_cast %109 : vector<1x8x1xf32> to vector<8x1xf32>
    %111 = vector.broadcast %110 : vector<8x1xf32> to vector<8x384xf32>
    %112 = arith.mulf %103, %111 : vector<8x384xf32>
    %113 = arith.addf %108, %112 : vector<8x384xf32>
    %c1_i32 = arith.constant 1 : i32
    %114 = tpu.dynamic_rotate %69 by %c1_i32 dim 1 : vector<8x384xf32>, i32 -> vector<8x384xf32>
    %c1_i32_25 = arith.constant 1 : i32
    %115 = tpu.dynamic_rotate %1 by %c1_i32_25 dim 1 : vector<8x384xf32>, i32 -> vector<8x384xf32>
    %116 = vector.extract_strided_slice %71 {offsets = [3, 0, 0], sizes = [1, 8, 1], strides = [1, 1, 1]} : vector<9x8x1xf32> to vector<1x8x1xf32>
    %117 = vector.shape_cast %116 : vector<1x8x1xf32> to vector<8x1xf32>
    %118 = vector.broadcast %117 : vector<8x1xf32> to vector<8x384xf32>
    %119 = arith.mulf %114, %118 : vector<8x384xf32>
    %120 = arith.addf %113, %119 : vector<8x384xf32>
    %121 = vector.extract_strided_slice %73 {offsets = [3, 0, 0], sizes = [1, 8, 1], strides = [1, 1, 1]} : vector<9x8x1xf32> to vector<1x8x1xf32>
    %122 = vector.shape_cast %121 : vector<1x8x1xf32> to vector<8x1xf32>
    %123 = vector.broadcast %122 : vector<8x1xf32> to vector<8x384xf32>
    %124 = arith.mulf %115, %123 : vector<8x384xf32>
    %125 = arith.addf %120, %124 : vector<8x384xf32>
    %126 = vector.extract_strided_slice %71 {offsets = [4, 0, 0], sizes = [1, 8, 1], strides = [1, 1, 1]} : vector<9x8x1xf32> to vector<1x8x1xf32>
    %127 = vector.shape_cast %126 : vector<1x8x1xf32> to vector<8x1xf32>
    %128 = vector.broadcast %127 : vector<8x1xf32> to vector<8x384xf32>
    %129 = arith.mulf %69, %128 : vector<8x384xf32>
    %130 = arith.addf %125, %129 : vector<8x384xf32>
    %131 = vector.extract_strided_slice %73 {offsets = [4, 0, 0], sizes = [1, 8, 1], strides = [1, 1, 1]} : vector<9x8x1xf32> to vector<1x8x1xf32>
    %132 = vector.shape_cast %131 : vector<1x8x1xf32> to vector<8x1xf32>
    %133 = vector.broadcast %132 : vector<8x1xf32> to vector<8x384xf32>
    %134 = arith.mulf %1, %133 : vector<8x384xf32>
    %135 = arith.addf %130, %134 : vector<8x384xf32>
    %c383_i32 = arith.constant 383 : i32
    %136 = tpu.dynamic_rotate %69 by %c383_i32 dim 1 : vector<8x384xf32>, i32 -> vector<8x384xf32>
    %c383_i32_26 = arith.constant 383 : i32
    %137 = tpu.dynamic_rotate %1 by %c383_i32_26 dim 1 : vector<8x384xf32>, i32 -> vector<8x384xf32>
    %138 = vector.extract_strided_slice %71 {offsets = [5, 0, 0], sizes = [1, 8, 1], strides = [1, 1, 1]} : vector<9x8x1xf32> to vector<1x8x1xf32>
    %139 = vector.shape_cast %138 : vector<1x8x1xf32> to vector<8x1xf32>
    %140 = vector.broadcast %139 : vector<8x1xf32> to vector<8x384xf32>
    %141 = arith.mulf %136, %140 : vector<8x384xf32>
    %142 = arith.addf %135, %141 : vector<8x384xf32>
    %143 = vector.extract_strided_slice %73 {offsets = [5, 0, 0], sizes = [1, 8, 1], strides = [1, 1, 1]} : vector<9x8x1xf32> to vector<1x8x1xf32>
    %144 = vector.shape_cast %143 : vector<1x8x1xf32> to vector<8x1xf32>
    %145 = vector.broadcast %144 : vector<8x1xf32> to vector<8x384xf32>
    %146 = arith.mulf %137, %145 : vector<8x384xf32>
    %147 = arith.addf %142, %146 : vector<8x384xf32>
    %c367_i32 = arith.constant 367 : i32
    %148 = tpu.dynamic_rotate %69 by %c367_i32 dim 1 : vector<8x384xf32>, i32 -> vector<8x384xf32>
    %c367_i32_27 = arith.constant 367 : i32
    %149 = tpu.dynamic_rotate %1 by %c367_i32_27 dim 1 : vector<8x384xf32>, i32 -> vector<8x384xf32>
    %150 = vector.extract_strided_slice %71 {offsets = [6, 0, 0], sizes = [1, 8, 1], strides = [1, 1, 1]} : vector<9x8x1xf32> to vector<1x8x1xf32>
    %151 = vector.shape_cast %150 : vector<1x8x1xf32> to vector<8x1xf32>
    %152 = vector.broadcast %151 : vector<8x1xf32> to vector<8x384xf32>
    %153 = arith.mulf %148, %152 : vector<8x384xf32>
    %154 = arith.addf %147, %153 : vector<8x384xf32>
    %155 = vector.extract_strided_slice %73 {offsets = [6, 0, 0], sizes = [1, 8, 1], strides = [1, 1, 1]} : vector<9x8x1xf32> to vector<1x8x1xf32>
    %156 = vector.shape_cast %155 : vector<1x8x1xf32> to vector<8x1xf32>
    %157 = vector.broadcast %156 : vector<8x1xf32> to vector<8x384xf32>
    %158 = arith.mulf %149, %157 : vector<8x384xf32>
    %159 = arith.addf %154, %158 : vector<8x384xf32>
    %c366_i32 = arith.constant 366 : i32
    %160 = tpu.dynamic_rotate %69 by %c366_i32 dim 1 : vector<8x384xf32>, i32 -> vector<8x384xf32>
    %c366_i32_28 = arith.constant 366 : i32
    %161 = tpu.dynamic_rotate %1 by %c366_i32_28 dim 1 : vector<8x384xf32>, i32 -> vector<8x384xf32>
    %162 = vector.extract_strided_slice %71 {offsets = [7, 0, 0], sizes = [1, 8, 1], strides = [1, 1, 1]} : vector<9x8x1xf32> to vector<1x8x1xf32>
    %163 = vector.shape_cast %162 : vector<1x8x1xf32> to vector<8x1xf32>
    %164 = vector.broadcast %163 : vector<8x1xf32> to vector<8x384xf32>
    %165 = arith.mulf %160, %164 : vector<8x384xf32>
    %166 = arith.addf %159, %165 : vector<8x384xf32>
    %167 = vector.extract_strided_slice %73 {offsets = [7, 0, 0], sizes = [1, 8, 1], strides = [1, 1, 1]} : vector<9x8x1xf32> to vector<1x8x1xf32>
    %168 = vector.shape_cast %167 : vector<1x8x1xf32> to vector<8x1xf32>
    %169 = vector.broadcast %168 : vector<8x1xf32> to vector<8x384xf32>
    %170 = arith.mulf %161, %169 : vector<8x384xf32>
    %171 = arith.addf %166, %170 : vector<8x384xf32>
    %c365_i32 = arith.constant 365 : i32
    %172 = tpu.dynamic_rotate %69 by %c365_i32 dim 1 : vector<8x384xf32>, i32 -> vector<8x384xf32>
    %c365_i32_29 = arith.constant 365 : i32
    %173 = tpu.dynamic_rotate %1 by %c365_i32_29 dim 1 : vector<8x384xf32>, i32 -> vector<8x384xf32>
    %174 = vector.extract_strided_slice %71 {offsets = [8, 0, 0], sizes = [1, 8, 1], strides = [1, 1, 1]} : vector<9x8x1xf32> to vector<1x8x1xf32>
    %175 = vector.shape_cast %174 : vector<1x8x1xf32> to vector<8x1xf32>
    %176 = vector.broadcast %175 : vector<8x1xf32> to vector<8x384xf32>
    %177 = arith.mulf %172, %176 : vector<8x384xf32>
    %178 = arith.addf %171, %177 : vector<8x384xf32>
    %179 = vector.extract_strided_slice %73 {offsets = [8, 0, 0], sizes = [1, 8, 1], strides = [1, 1, 1]} : vector<9x8x1xf32> to vector<1x8x1xf32>
    %180 = vector.shape_cast %179 : vector<1x8x1xf32> to vector<8x1xf32>
    %181 = vector.broadcast %180 : vector<8x1xf32> to vector<8x384xf32>
    %182 = arith.mulf %173, %181 : vector<8x384xf32>
    %183 = arith.addf %178, %182 : vector<8x384xf32>
    %cst_30 = arith.constant 0.000000e+00 : f32
    %184 = vector.broadcast %cst_30 : f32 to vector<8x384xf32>
    %185 = arith.maximumf %183, %184 : vector<8x384xf32>
    %186 = arith.mulf %185, %4 : vector<8x384xf32>
    %c1 = arith.constant 1 : index
    %c0_31 = arith.constant 0 : index
    %c0_32 = arith.constant 0 : index
    %c0_33 = arith.constant 0 : index
    %187 = vector.load %arg3[%c1, %c0_31, %c0_32, %c0_33] : memref<2x8x8x1xf32, #tpu.memory_space<vmem>>, vector<1x8x8x1xf32>
    %188 = vector.shape_cast %187 : vector<1x8x8x1xf32> to vector<8x8x1xf32>
    %c1_34 = arith.constant 1 : index
    %c0_35 = arith.constant 0 : index
    %c0_36 = arith.constant 0 : index
    %189 = vector.load %arg4[%c1_34, %c0_35, %c0_36] : memref<2x8x1xf32, #tpu.memory_space<vmem>>, vector<1x8x1xf32>
    %190 = vector.shape_cast %189 : vector<1x8x1xf32> to vector<8x1xf32>
    %191 = vector.shape_cast %190 : vector<8x1xf32> to vector<8x1xf32>
    %192 = vector.broadcast %191 : vector<8x1xf32> to vector<8x384xf32>
    %193 = vector.extract_strided_slice %188 {offsets = [0, 0, 0], sizes = [1, 8, 1], strides = [1, 1, 1]} : vector<8x8x1xf32> to vector<1x8x1xf32>
    %194 = vector.shape_cast %193 : vector<1x8x1xf32> to vector<8x1xf32>
    %195 = vector.extract_strided_slice %186 {offsets = [0, 0], sizes = [1, 384], strides = [1, 1]} : vector<8x384xf32> to vector<1x384xf32>
    %196 = vector.broadcast %194 : vector<8x1xf32> to vector<8x384xf32>
    %197 = vector.broadcast %195 : vector<1x384xf32> to vector<8x384xf32>
    %198 = arith.mulf %196, %197 : vector<8x384xf32>
    %199 = arith.addf %192, %198 : vector<8x384xf32>
    %200 = vector.extract_strided_slice %188 {offsets = [1, 0, 0], sizes = [1, 8, 1], strides = [1, 1, 1]} : vector<8x8x1xf32> to vector<1x8x1xf32>
    %201 = vector.shape_cast %200 : vector<1x8x1xf32> to vector<8x1xf32>
    %202 = vector.extract_strided_slice %186 {offsets = [1, 0], sizes = [1, 384], strides = [1, 1]} : vector<8x384xf32> to vector<1x384xf32>
    %203 = vector.broadcast %201 : vector<8x1xf32> to vector<8x384xf32>
    %204 = vector.broadcast %202 : vector<1x384xf32> to vector<8x384xf32>
    %205 = arith.mulf %203, %204 : vector<8x384xf32>
    %206 = arith.addf %199, %205 : vector<8x384xf32>
    %207 = vector.extract_strided_slice %188 {offsets = [2, 0, 0], sizes = [1, 8, 1], strides = [1, 1, 1]} : vector<8x8x1xf32> to vector<1x8x1xf32>
    %208 = vector.shape_cast %207 : vector<1x8x1xf32> to vector<8x1xf32>
    %209 = vector.extract_strided_slice %186 {offsets = [2, 0], sizes = [1, 384], strides = [1, 1]} : vector<8x384xf32> to vector<1x384xf32>
    %210 = vector.broadcast %208 : vector<8x1xf32> to vector<8x384xf32>
    %211 = vector.broadcast %209 : vector<1x384xf32> to vector<8x384xf32>
    %212 = arith.mulf %210, %211 : vector<8x384xf32>
    %213 = arith.addf %206, %212 : vector<8x384xf32>
    %214 = vector.extract_strided_slice %188 {offsets = [3, 0, 0], sizes = [1, 8, 1], strides = [1, 1, 1]} : vector<8x8x1xf32> to vector<1x8x1xf32>
    %215 = vector.shape_cast %214 : vector<1x8x1xf32> to vector<8x1xf32>
    %216 = vector.extract_strided_slice %186 {offsets = [3, 0], sizes = [1, 384], strides = [1, 1]} : vector<8x384xf32> to vector<1x384xf32>
    %217 = vector.broadcast %215 : vector<8x1xf32> to vector<8x384xf32>
    %218 = vector.broadcast %216 : vector<1x384xf32> to vector<8x384xf32>
    %219 = arith.mulf %217, %218 : vector<8x384xf32>
    %220 = arith.addf %213, %219 : vector<8x384xf32>
    %221 = vector.extract_strided_slice %188 {offsets = [4, 0, 0], sizes = [1, 8, 1], strides = [1, 1, 1]} : vector<8x8x1xf32> to vector<1x8x1xf32>
    %222 = vector.shape_cast %221 : vector<1x8x1xf32> to vector<8x1xf32>
    %223 = vector.extract_strided_slice %186 {offsets = [4, 0], sizes = [1, 384], strides = [1, 1]} : vector<8x384xf32> to vector<1x384xf32>
    %224 = vector.broadcast %222 : vector<8x1xf32> to vector<8x384xf32>
    %225 = vector.broadcast %223 : vector<1x384xf32> to vector<8x384xf32>
    %226 = arith.mulf %224, %225 : vector<8x384xf32>
    %227 = arith.addf %220, %226 : vector<8x384xf32>
    %228 = vector.extract_strided_slice %188 {offsets = [5, 0, 0], sizes = [1, 8, 1], strides = [1, 1, 1]} : vector<8x8x1xf32> to vector<1x8x1xf32>
    %229 = vector.shape_cast %228 : vector<1x8x1xf32> to vector<8x1xf32>
    %230 = vector.extract_strided_slice %186 {offsets = [5, 0], sizes = [1, 384], strides = [1, 1]} : vector<8x384xf32> to vector<1x384xf32>
    %231 = vector.broadcast %229 : vector<8x1xf32> to vector<8x384xf32>
    %232 = vector.broadcast %230 : vector<1x384xf32> to vector<8x384xf32>
    %233 = arith.mulf %231, %232 : vector<8x384xf32>
    %234 = arith.addf %227, %233 : vector<8x384xf32>
    %235 = vector.extract_strided_slice %188 {offsets = [6, 0, 0], sizes = [1, 8, 1], strides = [1, 1, 1]} : vector<8x8x1xf32> to vector<1x8x1xf32>
    %236 = vector.shape_cast %235 : vector<1x8x1xf32> to vector<8x1xf32>
    %237 = vector.extract_strided_slice %186 {offsets = [6, 0], sizes = [1, 384], strides = [1, 1]} : vector<8x384xf32> to vector<1x384xf32>
    %238 = vector.broadcast %236 : vector<8x1xf32> to vector<8x384xf32>
    %239 = vector.broadcast %237 : vector<1x384xf32> to vector<8x384xf32>
    %240 = arith.mulf %238, %239 : vector<8x384xf32>
    %241 = arith.addf %234, %240 : vector<8x384xf32>
    %242 = vector.extract_strided_slice %188 {offsets = [7, 0, 0], sizes = [1, 8, 1], strides = [1, 1, 1]} : vector<8x8x1xf32> to vector<1x8x1xf32>
    %243 = vector.shape_cast %242 : vector<1x8x1xf32> to vector<8x1xf32>
    %244 = vector.extract_strided_slice %186 {offsets = [7, 0], sizes = [1, 384], strides = [1, 1]} : vector<8x384xf32> to vector<1x384xf32>
    %245 = vector.broadcast %243 : vector<8x1xf32> to vector<8x384xf32>
    %246 = vector.broadcast %244 : vector<1x384xf32> to vector<8x384xf32>
    %247 = arith.mulf %245, %246 : vector<8x384xf32>
    %248 = arith.addf %241, %247 : vector<8x384xf32>
    %cst_37 = arith.constant 0.000000e+00 : f32
    %249 = vector.broadcast %cst_37 : f32 to vector<8x384xf32>
    %250 = arith.maximumf %248, %249 : vector<8x384xf32>
    %251 = arith.mulf %250, %4 : vector<8x384xf32>
    %c1_38 = arith.constant 1 : index
    %c0_39 = arith.constant 0 : index
    %c0_40 = arith.constant 0 : index
    %c0_41 = arith.constant 0 : index
    %252 = vector.load %arg5[%c1_38, %c0_39, %c0_40, %c0_41] : memref<2x9x8x1xf32, #tpu.memory_space<vmem>>, vector<1x9x8x1xf32>
    %253 = vector.shape_cast %252 : vector<1x9x8x1xf32> to vector<9x8x1xf32>
    %c1_42 = arith.constant 1 : index
    %c0_43 = arith.constant 0 : index
    %c0_44 = arith.constant 0 : index
    %c0_45 = arith.constant 0 : index
    %254 = vector.load %arg6[%c1_42, %c0_43, %c0_44, %c0_45] : memref<2x9x8x1xf32, #tpu.memory_space<vmem>>, vector<1x9x8x1xf32>
    %255 = vector.shape_cast %254 : vector<1x9x8x1xf32> to vector<9x8x1xf32>
    %c1_46 = arith.constant 1 : index
    %c0_47 = arith.constant 0 : index
    %c0_48 = arith.constant 0 : index
    %256 = vector.load %arg7[%c1_46, %c0_47, %c0_48] : memref<2x8x1xf32, #tpu.memory_space<vmem>>, vector<1x8x1xf32>
    %257 = vector.shape_cast %256 : vector<1x8x1xf32> to vector<8x1xf32>
    %258 = vector.shape_cast %257 : vector<8x1xf32> to vector<8x1xf32>
    %259 = vector.broadcast %258 : vector<8x1xf32> to vector<8x384xf32>
    %c19_i32_49 = arith.constant 19 : i32
    %260 = tpu.dynamic_rotate %251 by %c19_i32_49 dim 1 : vector<8x384xf32>, i32 -> vector<8x384xf32>
    %c19_i32_50 = arith.constant 19 : i32
    %261 = tpu.dynamic_rotate %186 by %c19_i32_50 dim 1 : vector<8x384xf32>, i32 -> vector<8x384xf32>
    %262 = vector.extract_strided_slice %253 {offsets = [0, 0, 0], sizes = [1, 8, 1], strides = [1, 1, 1]} : vector<9x8x1xf32> to vector<1x8x1xf32>
    %263 = vector.shape_cast %262 : vector<1x8x1xf32> to vector<8x1xf32>
    %264 = vector.broadcast %263 : vector<8x1xf32> to vector<8x384xf32>
    %265 = arith.mulf %260, %264 : vector<8x384xf32>
    %266 = arith.addf %259, %265 : vector<8x384xf32>
    %267 = vector.extract_strided_slice %255 {offsets = [0, 0, 0], sizes = [1, 8, 1], strides = [1, 1, 1]} : vector<9x8x1xf32> to vector<1x8x1xf32>
    %268 = vector.shape_cast %267 : vector<1x8x1xf32> to vector<8x1xf32>
    %269 = vector.broadcast %268 : vector<8x1xf32> to vector<8x384xf32>
    %270 = arith.mulf %261, %269 : vector<8x384xf32>
    %271 = arith.addf %266, %270 : vector<8x384xf32>
    %c18_i32_51 = arith.constant 18 : i32
    %272 = tpu.dynamic_rotate %251 by %c18_i32_51 dim 1 : vector<8x384xf32>, i32 -> vector<8x384xf32>
    %c18_i32_52 = arith.constant 18 : i32
    %273 = tpu.dynamic_rotate %186 by %c18_i32_52 dim 1 : vector<8x384xf32>, i32 -> vector<8x384xf32>
    %274 = vector.extract_strided_slice %253 {offsets = [1, 0, 0], sizes = [1, 8, 1], strides = [1, 1, 1]} : vector<9x8x1xf32> to vector<1x8x1xf32>
    %275 = vector.shape_cast %274 : vector<1x8x1xf32> to vector<8x1xf32>
    %276 = vector.broadcast %275 : vector<8x1xf32> to vector<8x384xf32>
    %277 = arith.mulf %272, %276 : vector<8x384xf32>
    %278 = arith.addf %271, %277 : vector<8x384xf32>
    %279 = vector.extract_strided_slice %255 {offsets = [1, 0, 0], sizes = [1, 8, 1], strides = [1, 1, 1]} : vector<9x8x1xf32> to vector<1x8x1xf32>
    %280 = vector.shape_cast %279 : vector<1x8x1xf32> to vector<8x1xf32>
    %281 = vector.broadcast %280 : vector<8x1xf32> to vector<8x384xf32>
    %282 = arith.mulf %273, %281 : vector<8x384xf32>
    %283 = arith.addf %278, %282 : vector<8x384xf32>
    %c17_i32_53 = arith.constant 17 : i32
    %284 = tpu.dynamic_rotate %251 by %c17_i32_53 dim 1 : vector<8x384xf32>, i32 -> vector<8x384xf32>
    %c17_i32_54 = arith.constant 17 : i32
    %285 = tpu.dynamic_rotate %186 by %c17_i32_54 dim 1 : vector<8x384xf32>, i32 -> vector<8x384xf32>
    %286 = vector.extract_strided_slice %253 {offsets = [2, 0, 0], sizes = [1, 8, 1], strides = [1, 1, 1]} : vector<9x8x1xf32> to vector<1x8x1xf32>
    %287 = vector.shape_cast %286 : vector<1x8x1xf32> to vector<8x1xf32>
    %288 = vector.broadcast %287 : vector<8x1xf32> to vector<8x384xf32>
    %289 = arith.mulf %284, %288 : vector<8x384xf32>
    %290 = arith.addf %283, %289 : vector<8x384xf32>
    %291 = vector.extract_strided_slice %255 {offsets = [2, 0, 0], sizes = [1, 8, 1], strides = [1, 1, 1]} : vector<9x8x1xf32> to vector<1x8x1xf32>
    %292 = vector.shape_cast %291 : vector<1x8x1xf32> to vector<8x1xf32>
    %293 = vector.broadcast %292 : vector<8x1xf32> to vector<8x384xf32>
    %294 = arith.mulf %285, %293 : vector<8x384xf32>
    %295 = arith.addf %290, %294 : vector<8x384xf32>
    %c1_i32_55 = arith.constant 1 : i32
    %296 = tpu.dynamic_rotate %251 by %c1_i32_55 dim 1 : vector<8x384xf32>, i32 -> vector<8x384xf32>
    %c1_i32_56 = arith.constant 1 : i32
    %297 = tpu.dynamic_rotate %186 by %c1_i32_56 dim 1 : vector<8x384xf32>, i32 -> vector<8x384xf32>
    %298 = vector.extract_strided_slice %253 {offsets = [3, 0, 0], sizes = [1, 8, 1], strides = [1, 1, 1]} : vector<9x8x1xf32> to vector<1x8x1xf32>
    %299 = vector.shape_cast %298 : vector<1x8x1xf32> to vector<8x1xf32>
    %300 = vector.broadcast %299 : vector<8x1xf32> to vector<8x384xf32>
    %301 = arith.mulf %296, %300 : vector<8x384xf32>
    %302 = arith.addf %295, %301 : vector<8x384xf32>
    %303 = vector.extract_strided_slice %255 {offsets = [3, 0, 0], sizes = [1, 8, 1], strides = [1, 1, 1]} : vector<9x8x1xf32> to vector<1x8x1xf32>
    %304 = vector.shape_cast %303 : vector<1x8x1xf32> to vector<8x1xf32>
    %305 = vector.broadcast %304 : vector<8x1xf32> to vector<8x384xf32>
    %306 = arith.mulf %297, %305 : vector<8x384xf32>
    %307 = arith.addf %302, %306 : vector<8x384xf32>
    %308 = vector.extract_strided_slice %253 {offsets = [4, 0, 0], sizes = [1, 8, 1], strides = [1, 1, 1]} : vector<9x8x1xf32> to vector<1x8x1xf32>
    %309 = vector.shape_cast %308 : vector<1x8x1xf32> to vector<8x1xf32>
    %310 = vector.broadcast %309 : vector<8x1xf32> to vector<8x384xf32>
    %311 = arith.mulf %251, %310 : vector<8x384xf32>
    %312 = arith.addf %307, %311 : vector<8x384xf32>
    %313 = vector.extract_strided_slice %255 {offsets = [4, 0, 0], sizes = [1, 8, 1], strides = [1, 1, 1]} : vector<9x8x1xf32> to vector<1x8x1xf32>
    %314 = vector.shape_cast %313 : vector<1x8x1xf32> to vector<8x1xf32>
    %315 = vector.broadcast %314 : vector<8x1xf32> to vector<8x384xf32>
    %316 = arith.mulf %186, %315 : vector<8x384xf32>
    %317 = arith.addf %312, %316 : vector<8x384xf32>
    %c383_i32_57 = arith.constant 383 : i32
    %318 = tpu.dynamic_rotate %251 by %c383_i32_57 dim 1 : vector<8x384xf32>, i32 -> vector<8x384xf32>
    %c383_i32_58 = arith.constant 383 : i32
    %319 = tpu.dynamic_rotate %186 by %c383_i32_58 dim 1 : vector<8x384xf32>, i32 -> vector<8x384xf32>
    %320 = vector.extract_strided_slice %253 {offsets = [5, 0, 0], sizes = [1, 8, 1], strides = [1, 1, 1]} : vector<9x8x1xf32> to vector<1x8x1xf32>
    %321 = vector.shape_cast %320 : vector<1x8x1xf32> to vector<8x1xf32>
    %322 = vector.broadcast %321 : vector<8x1xf32> to vector<8x384xf32>
    %323 = arith.mulf %318, %322 : vector<8x384xf32>
    %324 = arith.addf %317, %323 : vector<8x384xf32>
    %325 = vector.extract_strided_slice %255 {offsets = [5, 0, 0], sizes = [1, 8, 1], strides = [1, 1, 1]} : vector<9x8x1xf32> to vector<1x8x1xf32>
    %326 = vector.shape_cast %325 : vector<1x8x1xf32> to vector<8x1xf32>
    %327 = vector.broadcast %326 : vector<8x1xf32> to vector<8x384xf32>
    %328 = arith.mulf %319, %327 : vector<8x384xf32>
    %329 = arith.addf %324, %328 : vector<8x384xf32>
    %c367_i32_59 = arith.constant 367 : i32
    %330 = tpu.dynamic_rotate %251 by %c367_i32_59 dim 1 : vector<8x384xf32>, i32 -> vector<8x384xf32>
    %c367_i32_60 = arith.constant 367 : i32
    %331 = tpu.dynamic_rotate %186 by %c367_i32_60 dim 1 : vector<8x384xf32>, i32 -> vector<8x384xf32>
    %332 = vector.extract_strided_slice %253 {offsets = [6, 0, 0], sizes = [1, 8, 1], strides = [1, 1, 1]} : vector<9x8x1xf32> to vector<1x8x1xf32>
    %333 = vector.shape_cast %332 : vector<1x8x1xf32> to vector<8x1xf32>
    %334 = vector.broadcast %333 : vector<8x1xf32> to vector<8x384xf32>
    %335 = arith.mulf %330, %334 : vector<8x384xf32>
    %336 = arith.addf %329, %335 : vector<8x384xf32>
    %337 = vector.extract_strided_slice %255 {offsets = [6, 0, 0], sizes = [1, 8, 1], strides = [1, 1, 1]} : vector<9x8x1xf32> to vector<1x8x1xf32>
    %338 = vector.shape_cast %337 : vector<1x8x1xf32> to vector<8x1xf32>
    %339 = vector.broadcast %338 : vector<8x1xf32> to vector<8x384xf32>
    %340 = arith.mulf %331, %339 : vector<8x384xf32>
    %341 = arith.addf %336, %340 : vector<8x384xf32>
    %c366_i32_61 = arith.constant 366 : i32
    %342 = tpu.dynamic_rotate %251 by %c366_i32_61 dim 1 : vector<8x384xf32>, i32 -> vector<8x384xf32>
    %c366_i32_62 = arith.constant 366 : i32
    %343 = tpu.dynamic_rotate %186 by %c366_i32_62 dim 1 : vector<8x384xf32>, i32 -> vector<8x384xf32>
    %344 = vector.extract_strided_slice %253 {offsets = [7, 0, 0], sizes = [1, 8, 1], strides = [1, 1, 1]} : vector<9x8x1xf32> to vector<1x8x1xf32>
    %345 = vector.shape_cast %344 : vector<1x8x1xf32> to vector<8x1xf32>
    %346 = vector.broadcast %345 : vector<8x1xf32> to vector<8x384xf32>
    %347 = arith.mulf %342, %346 : vector<8x384xf32>
    %348 = arith.addf %341, %347 : vector<8x384xf32>
    %349 = vector.extract_strided_slice %255 {offsets = [7, 0, 0], sizes = [1, 8, 1], strides = [1, 1, 1]} : vector<9x8x1xf32> to vector<1x8x1xf32>
    %350 = vector.shape_cast %349 : vector<1x8x1xf32> to vector<8x1xf32>
    %351 = vector.broadcast %350 : vector<8x1xf32> to vector<8x384xf32>
    %352 = arith.mulf %343, %351 : vector<8x384xf32>
    %353 = arith.addf %348, %352 : vector<8x384xf32>
    %c365_i32_63 = arith.constant 365 : i32
    %354 = tpu.dynamic_rotate %251 by %c365_i32_63 dim 1 : vector<8x384xf32>, i32 -> vector<8x384xf32>
    %c365_i32_64 = arith.constant 365 : i32
    %355 = tpu.dynamic_rotate %186 by %c365_i32_64 dim 1 : vector<8x384xf32>, i32 -> vector<8x384xf32>
    %356 = vector.extract_strided_slice %253 {offsets = [8, 0, 0], sizes = [1, 8, 1], strides = [1, 1, 1]} : vector<9x8x1xf32> to vector<1x8x1xf32>
    %357 = vector.shape_cast %356 : vector<1x8x1xf32> to vector<8x1xf32>
    %358 = vector.broadcast %357 : vector<8x1xf32> to vector<8x384xf32>
    %359 = arith.mulf %354, %358 : vector<8x384xf32>
    %360 = arith.addf %353, %359 : vector<8x384xf32>
    %361 = vector.extract_strided_slice %255 {offsets = [8, 0, 0], sizes = [1, 8, 1], strides = [1, 1, 1]} : vector<9x8x1xf32> to vector<1x8x1xf32>
    %362 = vector.shape_cast %361 : vector<1x8x1xf32> to vector<8x1xf32>
    %363 = vector.broadcast %362 : vector<8x1xf32> to vector<8x384xf32>
    %364 = arith.mulf %355, %363 : vector<8x384xf32>
    %365 = arith.addf %360, %364 : vector<8x384xf32>
    %cst_65 = arith.constant 0.000000e+00 : f32
    %366 = vector.broadcast %cst_65 : f32 to vector<8x384xf32>
    %367 = arith.maximumf %365, %366 : vector<8x384xf32>
    %368 = arith.mulf %367, %4 : vector<8x384xf32>
    %c0_66 = arith.constant 0 : index
    %c0_67 = arith.constant 0 : index
    %c0_68 = arith.constant 0 : index
    %369 = vector.load %arg8[%c0_66, %c0_67, %c0_68] : memref<8x8x1xf32, #tpu.memory_space<vmem>>, vector<8x8x1xf32>
    %c0_69 = arith.constant 0 : index
    %c0_70 = arith.constant 0 : index
    %370 = vector.load %arg9[%c0_69, %c0_70] : memref<8x1xf32, #tpu.memory_space<vmem>>, vector<8x1xf32>
    %371 = vector.shape_cast %370 : vector<8x1xf32> to vector<8x1xf32>
    %372 = vector.broadcast %371 : vector<8x1xf32> to vector<8x384xf32>
    %373 = vector.extract_strided_slice %369 {offsets = [0, 0, 0], sizes = [1, 8, 1], strides = [1, 1, 1]} : vector<8x8x1xf32> to vector<1x8x1xf32>
    %374 = vector.shape_cast %373 : vector<1x8x1xf32> to vector<8x1xf32>
    %375 = vector.extract_strided_slice %368 {offsets = [0, 0], sizes = [1, 384], strides = [1, 1]} : vector<8x384xf32> to vector<1x384xf32>
    %376 = vector.broadcast %374 : vector<8x1xf32> to vector<8x384xf32>
    %377 = vector.broadcast %375 : vector<1x384xf32> to vector<8x384xf32>
    %378 = arith.mulf %376, %377 : vector<8x384xf32>
    %379 = arith.addf %372, %378 : vector<8x384xf32>
    %380 = vector.extract_strided_slice %369 {offsets = [1, 0, 0], sizes = [1, 8, 1], strides = [1, 1, 1]} : vector<8x8x1xf32> to vector<1x8x1xf32>
    %381 = vector.shape_cast %380 : vector<1x8x1xf32> to vector<8x1xf32>
    %382 = vector.extract_strided_slice %368 {offsets = [1, 0], sizes = [1, 384], strides = [1, 1]} : vector<8x384xf32> to vector<1x384xf32>
    %383 = vector.broadcast %381 : vector<8x1xf32> to vector<8x384xf32>
    %384 = vector.broadcast %382 : vector<1x384xf32> to vector<8x384xf32>
    %385 = arith.mulf %383, %384 : vector<8x384xf32>
    %386 = arith.addf %379, %385 : vector<8x384xf32>
    %387 = vector.extract_strided_slice %369 {offsets = [2, 0, 0], sizes = [1, 8, 1], strides = [1, 1, 1]} : vector<8x8x1xf32> to vector<1x8x1xf32>
    %388 = vector.shape_cast %387 : vector<1x8x1xf32> to vector<8x1xf32>
    %389 = vector.extract_strided_slice %368 {offsets = [2, 0], sizes = [1, 384], strides = [1, 1]} : vector<8x384xf32> to vector<1x384xf32>
    %390 = vector.broadcast %388 : vector<8x1xf32> to vector<8x384xf32>
    %391 = vector.broadcast %389 : vector<1x384xf32> to vector<8x384xf32>
    %392 = arith.mulf %390, %391 : vector<8x384xf32>
    %393 = arith.addf %386, %392 : vector<8x384xf32>
    %394 = vector.extract_strided_slice %369 {offsets = [3, 0, 0], sizes = [1, 8, 1], strides = [1, 1, 1]} : vector<8x8x1xf32> to vector<1x8x1xf32>
    %395 = vector.shape_cast %394 : vector<1x8x1xf32> to vector<8x1xf32>
    %396 = vector.extract_strided_slice %368 {offsets = [3, 0], sizes = [1, 384], strides = [1, 1]} : vector<8x384xf32> to vector<1x384xf32>
    %397 = vector.broadcast %395 : vector<8x1xf32> to vector<8x384xf32>
    %398 = vector.broadcast %396 : vector<1x384xf32> to vector<8x384xf32>
    %399 = arith.mulf %397, %398 : vector<8x384xf32>
    %400 = arith.addf %393, %399 : vector<8x384xf32>
    %401 = vector.extract_strided_slice %369 {offsets = [4, 0, 0], sizes = [1, 8, 1], strides = [1, 1, 1]} : vector<8x8x1xf32> to vector<1x8x1xf32>
    %402 = vector.shape_cast %401 : vector<1x8x1xf32> to vector<8x1xf32>
    %403 = vector.extract_strided_slice %368 {offsets = [4, 0], sizes = [1, 384], strides = [1, 1]} : vector<8x384xf32> to vector<1x384xf32>
    %404 = vector.broadcast %402 : vector<8x1xf32> to vector<8x384xf32>
    %405 = vector.broadcast %403 : vector<1x384xf32> to vector<8x384xf32>
    %406 = arith.mulf %404, %405 : vector<8x384xf32>
    %407 = arith.addf %400, %406 : vector<8x384xf32>
    %408 = vector.extract_strided_slice %369 {offsets = [5, 0, 0], sizes = [1, 8, 1], strides = [1, 1, 1]} : vector<8x8x1xf32> to vector<1x8x1xf32>
    %409 = vector.shape_cast %408 : vector<1x8x1xf32> to vector<8x1xf32>
    %410 = vector.extract_strided_slice %368 {offsets = [5, 0], sizes = [1, 384], strides = [1, 1]} : vector<8x384xf32> to vector<1x384xf32>
    %411 = vector.broadcast %409 : vector<8x1xf32> to vector<8x384xf32>
    %412 = vector.broadcast %410 : vector<1x384xf32> to vector<8x384xf32>
    %413 = arith.mulf %411, %412 : vector<8x384xf32>
    %414 = arith.addf %407, %413 : vector<8x384xf32>
    %415 = vector.extract_strided_slice %369 {offsets = [6, 0, 0], sizes = [1, 8, 1], strides = [1, 1, 1]} : vector<8x8x1xf32> to vector<1x8x1xf32>
    %416 = vector.shape_cast %415 : vector<1x8x1xf32> to vector<8x1xf32>
    %417 = vector.extract_strided_slice %368 {offsets = [6, 0], sizes = [1, 384], strides = [1, 1]} : vector<8x384xf32> to vector<1x384xf32>
    %418 = vector.broadcast %416 : vector<8x1xf32> to vector<8x384xf32>
    %419 = vector.broadcast %417 : vector<1x384xf32> to vector<8x384xf32>
    %420 = arith.mulf %418, %419 : vector<8x384xf32>
    %421 = arith.addf %414, %420 : vector<8x384xf32>
    %422 = vector.extract_strided_slice %369 {offsets = [7, 0, 0], sizes = [1, 8, 1], strides = [1, 1, 1]} : vector<8x8x1xf32> to vector<1x8x1xf32>
    %423 = vector.shape_cast %422 : vector<1x8x1xf32> to vector<8x1xf32>
    %424 = vector.extract_strided_slice %368 {offsets = [7, 0], sizes = [1, 384], strides = [1, 1]} : vector<8x384xf32> to vector<1x384xf32>
    %425 = vector.broadcast %423 : vector<8x1xf32> to vector<8x384xf32>
    %426 = vector.broadcast %424 : vector<1x384xf32> to vector<8x384xf32>
    %427 = arith.mulf %425, %426 : vector<8x384xf32>
    %428 = arith.addf %421, %427 : vector<8x384xf32>
    %cst_71 = arith.constant 0.000000e+00 : f32
    %429 = vector.broadcast %cst_71 : f32 to vector<8x384xf32>
    %430 = arith.maximumf %428, %429 : vector<8x384xf32>
    %431 = arith.mulf %430, %4 : vector<8x384xf32>
    %c0_72 = arith.constant 0 : index
    %c0_73 = arith.constant 0 : index
    %c0_74 = arith.constant 0 : index
    %432 = vector.load %arg10[%c0_72, %c0_73, %c0_74] : memref<1x8x384xf32, #tpu.memory_space<vmem>>, vector<1x8x384xf32>
    %433 = vector.shape_cast %432 : vector<1x8x384xf32> to vector<8x384xf32>
    %434 = vector.shape_cast %431 : vector<8x384xf32> to vector<1x8x384xf32>
    tpu.vector_store %arg10[%c0_72, %c0_73, %c0_74], %434 {strides = array<i32>} : memref<1x8x384xf32, #tpu.memory_space<vmem>>, vector<1x8x384xf32>,
    return
  }
  func.func @transform_0(%arg0: i32) -> (i32, i32, i32) {
    %c0_i32 = arith.constant 0 : i32
    %c0_i32_0 = arith.constant 0 : i32
    %c0_i32_1 = arith.constant 0 : i32
    return %arg0, %c0_i32, %c0_i32_0 : i32, i32, i32
  }
  func.func @transform_1(%arg0: i32) -> (i32, i32) {
    %c0_i32 = arith.constant 0 : i32
    %c0_i32_0 = arith.constant 0 : i32
    %c0_i32_1 = arith.constant 0 : i32
    return %c0_i32, %c0_i32_0 : i32, i32
  }
  func.func @transform_2(%arg0: i32) -> (i32, i32, i32, i32) {
    %c0_i32 = arith.constant 0 : i32
    %c0_i32_0 = arith.constant 0 : i32
    %c0_i32_1 = arith.constant 0 : i32
    %c0_i32_2 = arith.constant 0 : i32
    %c0_i32_3 = arith.constant 0 : i32
    return %c0_i32, %c0_i32_0, %c0_i32_1, %c0_i32_2 : i32, i32, i32, i32
  }
  func.func @transform_3(%arg0: i32) -> (i32, i32, i32) {
    %c0_i32 = arith.constant 0 : i32
    %c0_i32_0 = arith.constant 0 : i32
    %c0_i32_1 = arith.constant 0 : i32
    %c0_i32_2 = arith.constant 0 : i32
    return %c0_i32, %c0_i32_0, %c0_i32_1 : i32, i32, i32
  }
  func.func @transform_4(%arg0: i32) -> (i32, i32, i32, i32) {
    %c0_i32 = arith.constant 0 : i32
    %c0_i32_0 = arith.constant 0 : i32
    %c0_i32_1 = arith.constant 0 : i32
    %c0_i32_2 = arith.constant 0 : i32
    %c0_i32_3 = arith.constant 0 : i32
    return %c0_i32, %c0_i32_0, %c0_i32_1, %c0_i32_2 : i32, i32, i32, i32
  }
  func.func @transform_5(%arg0: i32) -> (i32, i32, i32, i32) {
    %c0_i32 = arith.constant 0 : i32
    %c0_i32_0 = arith.constant 0 : i32
    %c0_i32_1 = arith.constant 0 : i32
    %c0_i32_2 = arith.constant 0 : i32
    %c0_i32_3 = arith.constant 0 : i32
    return %c0_i32, %c0_i32_0, %c0_i32_1, %c0_i32_2 : i32, i32, i32, i32
  }
  func.func @transform_6(%arg0: i32) -> (i32, i32, i32) {
    %c0_i32 = arith.constant 0 : i32
    %c0_i32_0 = arith.constant 0 : i32
    %c0_i32_1 = arith.constant 0 : i32
    %c0_i32_2 = arith.constant 0 : i32
    return %c0_i32, %c0_i32_0, %c0_i32_1 : i32, i32, i32
  }
  func.func @transform_7(%arg0: i32) -> (i32, i32, i32) {
    %c0_i32 = arith.constant 0 : i32
    %c0_i32_0 = arith.constant 0 : i32
    %c0_i32_1 = arith.constant 0 : i32
    %c0_i32_2 = arith.constant 0 : i32
    return %c0_i32, %c0_i32_0, %c0_i32_1 : i32, i32, i32
  }
  func.func @transform_8(%arg0: i32) -> (i32, i32) {
    %c0_i32 = arith.constant 0 : i32
    %c0_i32_0 = arith.constant 0 : i32
    %c0_i32_1 = arith.constant 0 : i32
    return %c0_i32, %c0_i32_0 : i32, i32
  }
  func.func @transform_9(%arg0: i32) -> (i32, i32, i32) {
    %c0_i32 = arith.constant 0 : i32
    %c0_i32_0 = arith.constant 0 : i32
    %c0_i32_1 = arith.constant 0 : i32
    return %arg0, %c0_i32, %c0_i32_0 : i32, i32, i32
  }
}

</mosaic_0001>

<llo_original>
// kernel: tile.42
$region0: #{tile.42}
  #allocation0 [shape = 's32[1]{0}', space=sflag, size = 0x4, scoped, tag = 'scoped memory for tile.42']
  %s0 = inlined_call_operand.vmem [shape: f32[4], index: 0, kind: input, shape index: {}]
  %s1 = inlined_call_operand.vmem [shape: f32[2,4], index: 1, kind: output, shape index: {}]
  // Predicated region
  $region2: #{tile.42} parent=0 // pred_check
    _
  $region3: #{tile.42} parent=0 // pred_check_branch
    %3 = sbr.rel (0) target = $region5
  $region4: #{tile.42} parent=0 // pred_region
    _
  $region5: #{tile.42} parent=0 // pred_fallthru
    _
  %v4 = vld [vmem:[%s0] ss:$0 sm:$0xff]
  %5 = vst [vmem:[%s1] sm:$0x3] %v4

// kernel: tile.0
$region0: #{tile.0}
  %s0 = inlined_call_operand.vmem [shape: f32[2,4], index: 0, kind: input, shape index: {}]
  %s1 = inlined_call_operand.vmem [shape: f32[1,8,1], index: 1, kind: output, shape index: {}]
  $region1: #{tile.0} parent=0
    #allocation0 [shape = 'u8[4096]{0}', space=vmem, size = 0x1000, scoped, tag = 'scoped mem for input reshape']
    %s3 = sshllo.u32 0, 2
    %v4 = vld [vmem:[%s0] sm:%s3]
    %5 = vst [vmem:[#allocation0] sm:%s3] %v4
    %v6 = vld [vmem:[#allocation0] sm:$0x3]
    %vm7 = vcmask 7168
    %8 = vst.msk [vmem:[%s1] ss:$4 sm:$0x3] %vm7, %v6
    %v9 = vld [vmem:[#allocation0] sm:$0x3]
    %10 = vrot.lane.b32.xlu0 %v9, 127
    %v11 = vpop.permute.xlu0 %10
    %vm12 = vcmask 7168
    %s13 = scalar_lea.vmem %s1, 1
    %14 = vst.msk [vmem:[%s13] ss:$4 sm:$0x3] %vm12, %v11
    %v15 = vld [vmem:[#allocation0] sm:$0x3]
    %16 = vrot.lane.b32.xlu0 %v15, 126
    %v17 = vpop.permute.xlu0 %16
    %vm18 = vcmask 7168
    %s19 = scalar_lea.vmem %s1, 2
    %20 = vst.msk [vmem:[%s19] ss:$4 sm:$0x3] %vm18, %v17
    %v21 = vld [vmem:[#allocation0] sm:$0x3]
    %22 = vrot.lane.b32.xlu0 %v21, 125
    %v23 = vpop.permute.xlu0 %22
    %vm24 = vcmask 7168
    %s25 = scalar_lea.vmem %s1, 3
    %26 = vst.msk [vmem:[%s25] ss:$4 sm:$0x3] %vm24, %v23

// kernel: tile.4
$region0: #{tile.4}
  %s0 = inlined_call_operand.vmem [shape: f32[2,4], index: 0, kind: input, shape index: {}]
  %s1 = inlined_call_operand.vmem [shape: f32[8,1], index: 1, kind: output, shape index: {}]
  $region1: #{tile.4} parent=0
    #allocation0 [shape = 'u8[4096]{0}', space=vmem, size = 0x1000, scoped, tag = 'scoped mem for input reshape']
    %s3 = sshllo.u32 0, 2
    %v4 = vld [vmem:[%s0] sm:%s3]
    %5 = vst [vmem:[#allocation0] sm:%s3] %v4
    %v6 = vld [vmem:[#allocation0] sm:$0x3]
    %vm7 = vcmask 7168
    %8 = vst.msk [vmem:[%s1] ss:$4 sm:$0x3] %vm7, %v6
    %v9 = vld [vmem:[#allocation0] sm:$0x3]
    %10 = vrot.lane.b32.xlu0 %v9, 127
    %v11 = vpop.permute.xlu0 %10
    %vm12 = vcmask 7168
    %s13 = scalar_lea.vmem %s1, 1
    %14 = vst.msk [vmem:[%s13] ss:$4 sm:$0x3] %vm12, %v11
    %v15 = vld [vmem:[#allocation0] sm:$0x3]
    %16 = vrot.lane.b32.xlu0 %v15, 126
    %v17 = vpop.permute.xlu0 %16
    %vm18 = vcmask 7168
    %s19 = scalar_lea.vmem %s1, 2
    %20 = vst.msk [vmem:[%s19] ss:$4 sm:$0x3] %vm18, %v17
    %v21 = vld [vmem:[#allocation0] sm:$0x3]
    %22 = vrot.lane.b32.xlu0 %v21, 125
    %v23 = vpop.permute.xlu0 %22
    %vm24 = vcmask 7168
    %s25 = scalar_lea.vmem %s1, 3
    %26 = vst.msk [vmem:[%s25] ss:$4 sm:$0x3] %vm24, %v23

// kernel: _lambda_.1
$region0: #{_lambda_.1}
  #allocation0 [shape = 'u32[]', space=smem, size = 0x4, offset = 0x4, fixed_abs, tag = 'smem constant byte address 0x4 - core index']
  #allocation1 [shape = 'u32[144,128]{1,0:T(1,128)}', space=vmem, size = 0x12000, scoped, tag = 'internal scratch']
  %s0 = inlined_call_operand.vmem [shape: f32[1,8,384], index: 0, kind: input, shape index: {}]
  %s1 = inlined_call_operand.vmem [shape: f32[1,384], index: 1, kind: input, shape index: {}]
  %s2 = inlined_call_operand.vmem [shape: f32[2,8,8,1], index: 2, kind: input, shape index: {}]
  %s3 = inlined_call_operand.vmem [shape: f32[2,8,1], index: 3, kind: input, shape index: {}]
  %s4 = inlined_call_operand.vmem [shape: f32[2,9,8,1], index: 4, kind: input, shape index: {}]
  %s5 = inlined_call_operand.vmem [shape: f32[2,9,8,1], index: 5, kind: input, shape index: {}]
  %s6 = inlined_call_operand.vmem [shape: f32[2,8,1], index: 6, kind: input, shape index: {}]
  %s7 = inlined_call_operand.vmem [shape: f32[8,8,1], index: 7, kind: input, shape index: {}]
  %s8 = inlined_call_operand.vmem [shape: f32[8,1], index: 8, kind: input, shape index: {}]
  %s9 = inlined_call_operand.vmem [shape: f32[1,8,384], index: 9, kind: output, shape index: {}]
  %s10 = sld [smem:[#allocation0]]
  $region46: #{_lambda_.1} parent=0
    _
  %s12 = ssub.s32 1, %s10
  %s13 = scalar_select 0, %s12, %s10
  // Predicated region
  $region2: #{_lambda_.1} parent=0 // pred_check
    _
  $region3: #{_lambda_.1} parent=0 // pred_check_branch
    %15 = sbr.rel (0) target = $region5
  $region4: #{_lambda_.1} parent=0 // pred_region
    _
  $region5: #{_lambda_.1} parent=0 // pred_fallthru
    _
  // Predicated region
  $region6: #{_lambda_.1} parent=0 // pred_check
    _
  $region7: #{_lambda_.1} parent=0 // pred_check_branch
    %17 = sbr.rel (0) target = $region9
  $region8: #{_lambda_.1} parent=0 // pred_region
    _
  $region9: #{_lambda_.1} parent=0 // pred_fallthru
    _
  // Predicated region
  $region10: #{_lambda_.1} parent=0 // pred_check
    _
  $region11: #{_lambda_.1} parent=0 // pred_check_branch
    %19 = sbr.rel (0) target = $region13
  $region12: #{_lambda_.1} parent=0 // pred_region
    _
  $region13: #{_lambda_.1} parent=0 // pred_fallthru
    _
  // Predicated region
  $region14: #{_lambda_.1} parent=0 // pred_check
    _
  $region15: #{_lambda_.1} parent=0 // pred_check_branch
    %21 = sbr.rel (0) target = $region17
  $region16: #{_lambda_.1} parent=0 // pred_region
    _
  $region17: #{_lambda_.1} parent=0 // pred_fallthru
    _
  // Predicated region
  $region18: #{_lambda_.1} parent=0 // pred_check
    _
  $region19: #{_lambda_.1} parent=0 // pred_check_branch
    %23 = sbr.rel (0) target = $region21
  $region20: #{_lambda_.1} parent=0 // pred_region
    _
  $region21: #{_lambda_.1} parent=0 // pred_fallthru
    _
  // Predicated region
  $region22: #{_lambda_.1} parent=0 // pred_check
    _
  $region23: #{_lambda_.1} parent=0 // pred_check_branch
    %25 = sbr.rel (0) target = $region25
  $region24: #{_lambda_.1} parent=0 // pred_region
    _
  $region25: #{_lambda_.1} parent=0 // pred_fallthru
    _
  // Predicated region
  $region26: #{_lambda_.1} parent=0 // pred_check
    _
  $region27: #{_lambda_.1} parent=0 // pred_check_branch
    %27 = sbr.rel (0) target = $region29
  $region28: #{_lambda_.1} parent=0 // pred_region
    _
  $region29: #{_lambda_.1} parent=0 // pred_fallthru
    _
  // Predicated region
  $region30: #{_lambda_.1} parent=0 // pred_check
    _
  $region31: #{_lambda_.1} parent=0 // pred_check_branch
    %29 = sbr.rel (0) target = $region33
  $region32: #{_lambda_.1} parent=0 // pred_region
    _
  $region33: #{_lambda_.1} parent=0 // pred_fallthru
    _
  // Predicated region
  $region34: #{_lambda_.1} parent=0 // pred_check
    _
  $region35: #{_lambda_.1} parent=0 // pred_check_branch
    %31 = sbr.rel (0) target = $region37
  $region36: #{_lambda_.1} parent=0 // pred_region
    _
  $region37: #{_lambda_.1} parent=0 // pred_fallthru
    _
  %v32 = vld [vmem:[%s0] sm:$0xff]
  %v33 = vld [vmem:[%s0 + $0x8] sm:$0xff]
  %v34 = vld [vmem:[%s0 + $0x10] sm:$0xff]
  %v35 = vld [vmem:[%s1] sm:$0x7]
  %v37 = vlaneseq
  %v38 = vshrl.u32 %v37, 7
  %v39 = vsub.s32 0, %v38
  %v40 = vrot.slane %v35, %v39
  %v41 = vlaneseq
  %v42 = vshrl.u32 %v41, 7
  %v43 = vsub.s32 1, %v42
  %v44 = vrot.slane %v35, %v43
  %v45 = vlaneseq
  %v46 = vshrl.u32 %v45, 7
  %v47 = vsub.s32 2, %v46
  %v48 = vrot.slane %v35, %v47
  %v52 = vld [vmem:[%s2] sm:$0xff]
  %v53 = vld [vmem:[%s2 + $0x8] sm:$0xff]
  %v54 = vld [vmem:[%s2 + $0x10] sm:$0xff]
  %v55 = vld [vmem:[%s2 + $0x18] sm:$0xff]
  %v56 = vld [vmem:[%s2 + $0x20] sm:$0xff]
  %v57 = vld [vmem:[%s2 + $0x28] sm:$0xff]
  %v58 = vld [vmem:[%s2 + $0x30] sm:$0xff]
  %v59 = vld [vmem:[%s2 + $0x38] sm:$0xff]
  %v60 = vld [vmem:[%s3] sm:$0xff]
  %62 = vset.pattern.permute.xlu0 0
  %63 = vperm.xlu0 %62, %v60
  %v64 = vpop.permute.xlu0 %63
  %67 = vset.pattern.permute.xlu0 0
  %68 = vperm.xlu0 %67, %v52
  %v69 = vpop.permute.xlu0 %68
  %v71 = vlaneseq
  %v72 = vshrl.u32 %v71, 7
  %v73 = vsub.s32 0, %v72
  %v74 = vrot.slane %v32, %v73
  %v75 = vlaneseq
  %v76 = vshrl.u32 %v75, 7
  %v77 = vsub.s32 0, %v76
  %v78 = vrot.slane %v33, %v77
  %v79 = vlaneseq
  %v80 = vshrl.u32 %v79, 7
  %v81 = vsub.s32 0, %v80
  %v82 = vrot.slane %v34, %v81
  %v83 = vmul.f32 %v69, %v74
  %v84 = vmul.f32 %v69, %v78
  %v85 = vmul.f32 %v69, %v82
  %v86 = vadd.f32 %v64, %v83
  %v87 = vadd.f32 %v64, %v84
  %v88 = vadd.f32 %v64, %v85
  %90 = vset.pattern.permute.xlu0 0
  %91 = vperm.xlu0 %90, %v53
  %v92 = vpop.permute.xlu0 %91
  %v94 = vlaneseq
  %v95 = vshrl.u32 %v94, 7
  %v96 = vsub.s32 1, %v95
  %v97 = vrot.slane %v32, %v96
  %v98 = vlaneseq
  %v99 = vshrl.u32 %v98, 7
  %v100 = vsub.s32 1, %v99
  %v101 = vrot.slane %v33, %v100
  %v102 = vlaneseq
  %v103 = vshrl.u32 %v102, 7
  %v104 = vsub.s32 1, %v103
  %v105 = vrot.slane %v34, %v104
  %v106 = vmul.f32 %v92, %v97
  %v107 = vmul.f32 %v92, %v101
  %v108 = vmul.f32 %v92, %v105
  %v109 = vadd.f32 %v86, %v106
  %v110 = vadd.f32 %v87, %v107
  %v111 = vadd.f32 %v88, %v108
  %113 = vset.pattern.permute.xlu0 0
  %114 = vperm.xlu0 %113, %v54
  %v115 = vpop.permute.xlu0 %114
  %v117 = vlaneseq
  %v118 = vshrl.u32 %v117, 7
  %v119 = vsub.s32 2, %v118
  %v120 = vrot.slane %v32, %v119
  %v121 = vlaneseq
  %v122 = vshrl.u32 %v121, 7
  %v123 = vsub.s32 2, %v122
  %v124 = vrot.slane %v33, %v123
  %v125 = vlaneseq
  %v126 = vshrl.u32 %v125, 7
  %v127 = vsub.s32 2, %v126
  %v128 = vrot.slane %v34, %v127
  %v129 = vmul.f32 %v115, %v120
  %v130 = vmul.f32 %v115, %v124
  %v131 = vmul.f32 %v115, %v128
  %v132 = vadd.f32 %v109, %v129
  %v133 = vadd.f32 %v110, %v130
  %v134 = vadd.f32 %v111, %v131
  %136 = vset.pattern.permute.xlu0 0
  %137 = vperm.xlu0 %136, %v55
  %v138 = vpop.permute.xlu0 %137
  %v140 = vlaneseq
  %v141 = vshrl.u32 %v140, 7
  %v142 = vsub.s32 3, %v141
  %v143 = vrot.slane %v32, %v142
  %v144 = vlaneseq
  %v145 = vshrl.u32 %v144, 7
  %v146 = vsub.s32 3, %v145
  %v147 = vrot.slane %v33, %v146
  %v148 = vlaneseq
  %v149 = vshrl.u32 %v148, 7
  %v150 = vsub.s32 3, %v149
  %v151 = vrot.slane %v34, %v150
  %v152 = vmul.f32 %v138, %v143
  %v153 = vmul.f32 %v138, %v147
  %v154 = vmul.f32 %v138, %v151
  %v155 = vadd.f32 %v132, %v152
  %v156 = vadd.f32 %v133, %v153
  %v157 = vadd.f32 %v134, %v154
  %159 = vset.pattern.permute.xlu0 0
  %160 = vperm.xlu0 %159, %v56
  %v161 = vpop.permute.xlu0 %160
  %v163 = vlaneseq
  %v164 = vshrl.u32 %v163, 7
  %v165 = vsub.s32 4, %v164
  %v166 = vrot.slane %v32, %v165
  %v167 = vlaneseq
  %v168 = vshrl.u32 %v167, 7
  %v169 = vsub.s32 4, %v168
  %v170 = vrot.slane %v33, %v169
  %v171 = vlaneseq
  %v172 = vshrl.u32 %v171, 7
  %v173 = vsub.s32 4, %v172
  %v174 = vrot.slane %v34, %v173
  %v175 = vmul.f32 %v161, %v166
  %v176 = vmul.f32 %v161, %v170
  %v177 = vmul.f32 %v161, %v174
  %v178 = vadd.f32 %v155, %v175
  %v179 = vadd.f32 %v156, %v176
  %v180 = vadd.f32 %v157, %v177
  %182 = vset.pattern.permute.xlu0 0
  %183 = vperm.xlu0 %182, %v57
  %v184 = vpop.permute.xlu0 %183
  %v186 = vlaneseq
  %v187 = vshrl.u32 %v186, 7
  %v188 = vsub.s32 5, %v187
  %v189 = vrot.slane %v32, %v188
  %v190 = vlaneseq
  %v191 = vshrl.u32 %v190, 7
  %v192 = vsub.s32 5, %v191
  %v193 = vrot.slane %v33, %v192
  %v194 = vlaneseq
  %v195 = vshrl.u32 %v194, 7
  %v196 = vsub.s32 5, %v195
  %v197 = vrot.slane %v34, %v196
  %v198 = vmul.f32 %v184, %v189
  %v199 = vmul.f32 %v184, %v193
  %v200 = vmul.f32 %v184, %v197
  %v201 = vadd.f32 %v178, %v198
  %v202 = vadd.f32 %v179, %v199
  %v203 = vadd.f32 %v180, %v200
  %205 = vset.pattern.permute.xlu0 0
  %206 = vperm.xlu0 %205, %v58
  %v207 = vpop.permute.xlu0 %206
  %v209 = vlaneseq
  %v210 = vshrl.u32 %v209, 7
  %v211 = vsub.s32 6, %v210
  %v212 = vrot.slane %v32, %v211
  %v213 = vlaneseq
  %v214 = vshrl.u32 %v213, 7
  %v215 = vsub.s32 6, %v214
  %v216 = vrot.slane %v33, %v215
  %v217 = vlaneseq
  %v218 = vshrl.u32 %v217, 7
  %v219 = vsub.s32 6, %v218
  %v220 = vrot.slane %v34, %v219
  %v221 = vmul.f32 %v207, %v212
  %v222 = vmul.f32 %v207, %v216
  %v223 = vmul.f32 %v207, %v220
  %v224 = vadd.f32 %v201, %v221
  %v225 = vadd.f32 %v202, %v222
  %v226 = vadd.f32 %v203, %v223
  %228 = vset.pattern.permute.xlu0 0
  %229 = vperm.xlu0 %228, %v59
  %v230 = vpop.permute.xlu0 %229
  %v232 = vlaneseq
  %v233 = vshrl.u32 %v232, 7
  %v234 = vsub.s32 7, %v233
  %v235 = vrot.slane %v32, %v234
  %v236 = vlaneseq
  %v237 = vshrl.u32 %v236, 7
  %v238 = vsub.s32 7, %v237
  %v239 = vrot.slane %v33, %v238
  %v240 = vlaneseq
  %v241 = vshrl.u32 %v240, 7
  %v242 = vsub.s32 7, %v241
  %v243 = vrot.slane %v34, %v242
  %v244 = vmul.f32 %v230, %v235
  %v245 = vmul.f32 %v230, %v239
  %v246 = vmul.f32 %v230, %v243
  %v247 = vadd.f32 %v224, %v244
  %v248 = vadd.f32 %v225, %v245
  %v249 = vadd.f32 %v226, %v246
  %v250 = vmax.f32 %v247, 0.0
  %v251 = vmax.f32 %v248, 0.0
  %v252 = vmax.f32 %v249, 0.0
  %v253 = vmul.f32 %v250, %v40
  %v254 = vmul.f32 %v251, %v44
  %v255 = vmul.f32 %v252, %v48
  %v256 = vld [vmem:[%s4] sm:$0xff]
  %v257 = vld [vmem:[%s4 + $0x8] sm:$0xff]
  %v258 = vld [vmem:[%s4 + $0x10] sm:$0xff]
  %v259 = vld [vmem:[%s4 + $0x18] sm:$0xff]
  %v260 = vld [vmem:[%s4 + $0x20] sm:$0xff]
  %v261 = vld [vmem:[%s4 + $0x28] sm:$0xff]
  %v262 = vld [vmem:[%s4 + $0x30] sm:$0xff]
  %v263 = vld [vmem:[%s4 + $0x38] sm:$0xff]
  %v264 = vld [vmem:[%s4 + $0x40] sm:$0xff]
  %v265 = vld [vmem:[%s5] sm:$0xff]
  %v266 = vld [vmem:[%s5 + $0x8] sm:$0xff]
  %v267 = vld [vmem:[%s5 + $0x10] sm:$0xff]
  %v268 = vld [vmem:[%s5 + $0x18] sm:$0xff]
  %v269 = vld [vmem:[%s5 + $0x20] sm:$0xff]
  %v270 = vld [vmem:[%s5 + $0x28] sm:$0xff]
  %v271 = vld [vmem:[%s5 + $0x30] sm:$0xff]
  %v272 = vld [vmem:[%s5 + $0x38] sm:$0xff]
  %v273 = vld [vmem:[%s5 + $0x40] sm:$0xff]
  %v274 = vld [vmem:[%s6] sm:$0xff]
  %276 = vset.pattern.permute.xlu0 0
  %277 = vperm.xlu0 %276, %v274
  %v278 = vpop.permute.xlu0 %277
  %280 = vrot.lane.b32.xlu0 %v253, 19
  %v281 = vpop.permute.xlu0 %280
  %282 = vrot.lane.b32.xlu0 %v254, 19
  %v283 = vpop.permute.xlu0 %282
  %284 = vrot.lane.b32.xlu0 %v255, 19
  %v285 = vpop.permute.xlu0 %284
  %v286 = vlaneseq
  %v287 = vand.u32 %v286, 127
  %vm288 = vcmp.lt.s32.totalorder %v287, 19
  %v289 = vsel %vm288, %v283, %v285
  %v290 = vsel %vm288, %v281, %v283
  %v291 = vsel %vm288, %v285, %v281
  %292 = vrot.lane.b32.xlu0 %v32, 19
  %v293 = vpop.permute.xlu0 %292
  %294 = vrot.lane.b32.xlu0 %v33, 19
  %v295 = vpop.permute.xlu0 %294
  %296 = vrot.lane.b32.xlu0 %v34, 19
  %v297 = vpop.permute.xlu0 %296
  %v298 = vsel %vm288, %v295, %v297
  %v299 = vsel %vm288, %v293, %v295
  %v300 = vsel %vm288, %v297, %v293
  %302 = vset.pattern.permute.xlu0 0
  %303 = vperm.xlu0 %302, %v256
  %v304 = vpop.permute.xlu0 %303
  %v306 = vmul.f32 %v291, %v304
  %v307 = vmul.f32 %v290, %v304
  %v308 = vmul.f32 %v289, %v304
  %v309 = vadd.f32 %v278, %v306
  %v310 = vadd.f32 %v278, %v307
  %v311 = vadd.f32 %v278, %v308
  %313 = vset.pattern.permute.xlu0 0
  %314 = vperm.xlu0 %313, %v265
  %v315 = vpop.permute.xlu0 %314
  %v317 = vmul.f32 %v300, %v315
  %v318 = vmul.f32 %v299, %v315
  %v319 = vmul.f32 %v298, %v315
  %v320 = vadd.f32 %v309, %v317
  %v321 = vadd.f32 %v310, %v318
  %v322 = vadd.f32 %v311, %v319
  %323 = vrot.lane.b32.xlu0 %v253, 18
  %v324 = vpop.permute.xlu0 %323
  %325 = vrot.lane.b32.xlu0 %v254, 18
  %v326 = vpop.permute.xlu0 %325
  %327 = vrot.lane.b32.xlu0 %v255, 18
  %v328 = vpop.permute.xlu0 %327
  %vm329 = vcmp.lt.s32.totalorder %v287, 18
  %v330 = vsel %vm329, %v326, %v328
  %v331 = vsel %vm329, %v324, %v326
  %v332 = vsel %vm329, %v328, %v324
  %333 = vrot.lane.b32.xlu0 %v32, 18
  %v334 = vpop.permute.xlu0 %333
  %335 = vrot.lane.b32.xlu0 %v33, 18
  %v336 = vpop.permute.xlu0 %335
  %337 = vrot.lane.b32.xlu0 %v34, 18
  %v338 = vpop.permute.xlu0 %337
  %v339 = vsel %vm329, %v336, %v338
  %v340 = vsel %vm329, %v334, %v336
  %v341 = vsel %vm329, %v338, %v334
  %343 = vset.pattern.permute.xlu0 0
  %344 = vperm.xlu0 %343, %v257
  %v345 = vpop.permute.xlu0 %344
  %v347 = vmul.f32 %v332, %v345
  %v348 = vmul.f32 %v331, %v345
  %v349 = vmul.f32 %v330, %v345
  %v350 = vadd.f32 %v320, %v347
  %v351 = vadd.f32 %v321, %v348
  %v352 = vadd.f32 %v322, %v349
  %354 = vset.pattern.permute.xlu0 0
  %355 = vperm.xlu0 %354, %v266
  %v356 = vpop.permute.xlu0 %355
  %v358 = vmul.f32 %v341, %v356
  %v359 = vmul.f32 %v340, %v356
  %v360 = vmul.f32 %v339, %v356
  %v361 = vadd.f32 %v350, %v358
  %v362 = vadd.f32 %v351, %v359
  %v363 = vadd.f32 %v352, %v360
  %364 = vrot.lane.b32.xlu0 %v253, 17
  %v365 = vpop.permute.xlu0 %364
  %366 = vrot.lane.b32.xlu0 %v254, 17
  %v367 = vpop.permute.xlu0 %366
  %368 = vrot.lane.b32.xlu0 %v255, 17
  %v369 = vpop.permute.xlu0 %368
  %vm370 = vcmp.lt.s32.totalorder %v287, 17
  %v371 = vsel %vm370, %v367, %v369
  %v372 = vsel %vm370, %v365, %v367
  %v373 = vsel %vm370, %v369, %v365
  %374 = vrot.lane.b32.xlu0 %v32, 17
  %v375 = vpop.permute.xlu0 %374
  %376 = vrot.lane.b32.xlu0 %v33, 17
  %v377 = vpop.permute.xlu0 %376
  %378 = vrot.lane.b32.xlu0 %v34, 17
  %v379 = vpop.permute.xlu0 %378
  %v380 = vsel %vm370, %v377, %v379
  %v381 = vsel %vm370, %v375, %v377
  %v382 = vsel %vm370, %v379, %v375
  %384 = vset.pattern.permute.xlu0 0
  %385 = vperm.xlu0 %384, %v258
  %v386 = vpop.permute.xlu0 %385
  %v388 = vmul.f32 %v373, %v386
  %v389 = vmul.f32 %v372, %v386
  %v390 = vmul.f32 %v371, %v386
  %v391 = vadd.f32 %v361, %v388
  %v392 = vadd.f32 %v362, %v389
  %v393 = vadd.f32 %v363, %v390
  %395 = vset.pattern.permute.xlu0 0
  %396 = vperm.xlu0 %395, %v267
  %v397 = vpop.permute.xlu0 %396
  %v399 = vmul.f32 %v382, %v397
  %v400 = vmul.f32 %v381, %v397
  %v401 = vmul.f32 %v380, %v397
  %v402 = vadd.f32 %v391, %v399
  %v403 = vadd.f32 %v392, %v400
  %v404 = vadd.f32 %v393, %v401
  %405 = vrot.lane.b32.xlu0 %v253, 1
  %v406 = vpop.permute.xlu0 %405
  %407 = vrot.lane.b32.xlu0 %v254, 1
  %v408 = vpop.permute.xlu0 %407
  %409 = vrot.lane.b32.xlu0 %v255, 1
  %v410 = vpop.permute.xlu0 %409
  %vm411 = vcmp.lt.s32.totalorder %v287, 1
  %v412 = vsel %vm411, %v408, %v410
  %v413 = vsel %vm411, %v406, %v408
  %v414 = vsel %vm411, %v410, %v406
  %415 = vrot.lane.b32.xlu0 %v32, 1
  %v416 = vpop.permute.xlu0 %415
  %417 = vrot.lane.b32.xlu0 %v33, 1
  %v418 = vpop.permute.xlu0 %417
  %419 = vrot.lane.b32.xlu0 %v34, 1
  %v420 = vpop.permute.xlu0 %419
  %v421 = vsel %vm411, %v418, %v420
  %v422 = vsel %vm411, %v416, %v418
  %v423 = vsel %vm411, %v420, %v416
  %425 = vset.pattern.permute.xlu0 0
  %426 = vperm.xlu0 %425, %v259
  %v427 = vpop.permute.xlu0 %426
  %v429 = vmul.f32 %v414, %v427
  %v430 = vmul.f32 %v413, %v427
  %v431 = vmul.f32 %v412, %v427
  %v432 = vadd.f32 %v402, %v429
  %v433 = vadd.f32 %v403, %v430
  %v434 = vadd.f32 %v404, %v431
  %436 = vset.pattern.permute.xlu0 0
  %437 = vperm.xlu0 %436, %v268
  %v438 = vpop.permute.xlu0 %437
  %v440 = vmul.f32 %v423, %v438
  %v441 = vmul.f32 %v422, %v438
  %v442 = vmul.f32 %v421, %v438
  %v443 = vadd.f32 %v432, %v440
  %v444 = vadd.f32 %v433, %v441
  %v445 = vadd.f32 %v434, %v442
  %447 = vset.pattern.permute.xlu0 0
  %448 = vperm.xlu0 %447, %v260
  %v449 = vpop.permute.xlu0 %448
  %v451 = vmul.f32 %v253, %v449
  %v452 = vmul.f32 %v254, %v449
  %v453 = vmul.f32 %v255, %v449
  %v454 = vadd.f32 %v443, %v451
  %v455 = vadd.f32 %v444, %v452
  %v456 = vadd.f32 %v445, %v453
  %458 = vset.pattern.permute.xlu0 0
  %459 = vperm.xlu0 %458, %v269
  %v460 = vpop.permute.xlu0 %459
  %v462 = vmul.f32 %v32, %v460
  %v463 = vmul.f32 %v33, %v460
  %v464 = vmul.f32 %v34, %v460
  %v465 = vadd.f32 %v454, %v462
  %v466 = vadd.f32 %v455, %v463
  %v467 = vadd.f32 %v456, %v464
  %468 = vrot.lane.b32.xlu0 %v253, 127
  %v469 = vpop.permute.xlu0 %468
  %470 = vrot.lane.b32.xlu0 %v254, 127
  %v471 = vpop.permute.xlu0 %470
  %472 = vrot.lane.b32.xlu0 %v255, 127
  %v473 = vpop.permute.xlu0 %472
  %vm474 = vcmp.lt.s32.totalorder %v287, 127
  %v475 = vsel %vm474, %v471, %v473
  %v476 = vsel %vm474, %v469, %v471
  %v477 = vsel %vm474, %v473, %v469
  %478 = vrot.lane.b32.xlu0 %v32, 127
  %v479 = vpop.permute.xlu0 %478
  %480 = vrot.lane.b32.xlu0 %v33, 127
  %v481 = vpop.permute.xlu0 %480
  %482 = vrot.lane.b32.xlu0 %v34, 127
  %v483 = vpop.permute.xlu0 %482
  %v484 = vsel %vm474, %v481, %v483
  %v485 = vsel %vm474, %v479, %v481
  %v486 = vsel %vm474, %v483, %v479
  %488 = vset.pattern.permute.xlu0 0
  %489 = vperm.xlu0 %488, %v261
  %v490 = vpop.permute.xlu0 %489
  %v492 = vmul.f32 %v476, %v490
  %v493 = vmul.f32 %v475, %v490
  %v494 = vmul.f32 %v477, %v490
  %v495 = vadd.f32 %v465, %v492
  %v496 = vadd.f32 %v466, %v493
  %v497 = vadd.f32 %v467, %v494
  %499 = vset.pattern.permute.xlu0 0
  %500 = vperm.xlu0 %499, %v270
  %v501 = vpop.permute.xlu0 %500
  %v503 = vmul.f32 %v485, %v501
  %v504 = vmul.f32 %v484, %v501
  %v505 = vmul.f32 %v486, %v501
  %v506 = vadd.f32 %v495, %v503
  %v507 = vadd.f32 %v496, %v504
  %v508 = vadd.f32 %v497, %v505
  %509 = vrot.lane.b32.xlu0 %v253, 111
  %v510 = vpop.permute.xlu0 %509
  %511 = vrot.lane.b32.xlu0 %v254, 111
  %v512 = vpop.permute.xlu0 %511
  %513 = vrot.lane.b32.xlu0 %v255, 111
  %v514 = vpop.permute.xlu0 %513
  %vm515 = vcmp.lt.s32.totalorder %v287, 111
  %v516 = vsel %vm515, %v512, %v514
  %v517 = vsel %vm515, %v510, %v512
  %v518 = vsel %vm515, %v514, %v510
  %519 = vrot.lane.b32.xlu0 %v32, 111
  %v520 = vpop.permute.xlu0 %519
  %521 = vrot.lane.b32.xlu0 %v33, 111
  %v522 = vpop.permute.xlu0 %521
  %523 = vrot.lane.b32.xlu0 %v34, 111
  %v524 = vpop.permute.xlu0 %523
  %v525 = vsel %vm515, %v522, %v524
  %v526 = vsel %vm515, %v520, %v522
  %v527 = vsel %vm515, %v524, %v520
  %529 = vset.pattern.permute.xlu0 0
  %530 = vperm.xlu0 %529, %v262
  %v531 = vpop.permute.xlu0 %530
  %v533 = vmul.f32 %v517, %v531
  %v534 = vmul.f32 %v516, %v531
  %v535 = vmul.f32 %v518, %v531
  %v536 = vadd.f32 %v506, %v533
  %v537 = vadd.f32 %v507, %v534
  %v538 = vadd.f32 %v508, %v535
  %540 = vset.pattern.permute.xlu0 0
  %541 = vperm.xlu0 %540, %v271
  %v542 = vpop.permute.xlu0 %541
  %v544 = vmul.f32 %v526, %v542
  %v545 = vmul.f32 %v525, %v542
  %v546 = vmul.f32 %v527, %v542
  %v547 = vadd.f32 %v536, %v544
  %v548 = vadd.f32 %v537, %v545
  %v549 = vadd.f32 %v538, %v546
  %550 = vrot.lane.b32.xlu0 %v253, 110
  %v551 = vpop.permute.xlu0 %550
  %552 = vrot.lane.b32.xlu0 %v254, 110
  %v553 = vpop.permute.xlu0 %552
  %554 = vrot.lane.b32.xlu0 %v255, 110
  %v555 = vpop.permute.xlu0 %554
  %vm556 = vcmp.lt.s32.totalorder %v287, 110
  %v557 = vsel %vm556, %v553, %v555
  %v558 = vsel %vm556, %v551, %v553
  %v559 = vsel %vm556, %v555, %v551
  %560 = vrot.lane.b32.xlu0 %v32, 110
  %v561 = vpop.permute.xlu0 %560
  %562 = vrot.lane.b32.xlu0 %v33, 110
  %v563 = vpop.permute.xlu0 %562
  %564 = vrot.lane.b32.xlu0 %v34, 110
  %v565 = vpop.permute.xlu0 %564
  %v566 = vsel %vm556, %v563, %v565
  %v567 = vsel %vm556, %v561, %v563
  %v568 = vsel %vm556, %v565, %v561
  %570 = vset.pattern.permute.xlu0 0
  %571 = vperm.xlu0 %570, %v263
  %v572 = vpop.permute.xlu0 %571
  %v574 = vmul.f32 %v558, %v572
  %v575 = vmul.f32 %v557, %v572
  %v576 = vmul.f32 %v559, %v572
  %v577 = vadd.f32 %v547, %v574
  %v578 = vadd.f32 %v548, %v575
  %v579 = vadd.f32 %v549, %v576
  %581 = vset.pattern.permute.xlu0 0
  %582 = vperm.xlu0 %581, %v272
  %v583 = vpop.permute.xlu0 %582
  %v585 = vmul.f32 %v567, %v583
  %v586 = vmul.f32 %v566, %v583
  %v587 = vmul.f32 %v568, %v583
  %v588 = vadd.f32 %v577, %v585
  %v589 = vadd.f32 %v578, %v586
  %v590 = vadd.f32 %v579, %v587
  %591 = vrot.lane.b32.xlu0 %v253, 109
  %v592 = vpop.permute.xlu0 %591
  %593 = vrot.lane.b32.xlu0 %v254, 109
  %v594 = vpop.permute.xlu0 %593
  %595 = vrot.lane.b32.xlu0 %v255, 109
  %v596 = vpop.permute.xlu0 %595
  %vm597 = vcmp.lt.s32.totalorder %v287, 109
  %v598 = vsel %vm597, %v594, %v596
  %v599 = vsel %vm597, %v592, %v594
  %v600 = vsel %vm597, %v596, %v592
  %601 = vrot.lane.b32.xlu0 %v32, 109
  %v602 = vpop.permute.xlu0 %601
  %603 = vrot.lane.b32.xlu0 %v33, 109
  %v604 = vpop.permute.xlu0 %603
  %605 = vrot.lane.b32.xlu0 %v34, 109
  %v606 = vpop.permute.xlu0 %605
  %v607 = vsel %vm597, %v604, %v606
  %v608 = vsel %vm597, %v602, %v604
  %v609 = vsel %vm597, %v606, %v602
  %611 = vset.pattern.permute.xlu0 0
  %612 = vperm.xlu0 %611, %v264
  %v613 = vpop.permute.xlu0 %612
  %v615 = vmul.f32 %v599, %v613
  %v616 = vmul.f32 %v598, %v613
  %v617 = vmul.f32 %v600, %v613
  %v618 = vadd.f32 %v588, %v615
  %v619 = vadd.f32 %v589, %v616
  %v620 = vadd.f32 %v590, %v617
  %622 = vset.pattern.permute.xlu0 0
  %623 = vperm.xlu0 %622, %v273
  %v624 = vpop.permute.xlu0 %623
  %v626 = vmul.f32 %v608, %v624
  %v627 = vmul.f32 %v607, %v624
  %v628 = vmul.f32 %v609, %v624
  %v629 = vadd.f32 %v618, %v626
  %v630 = vadd.f32 %v619, %v627
  %v631 = vadd.f32 %v620, %v628
  %v632 = vmax.f32 %v629, 0.0
  %v633 = vmax.f32 %v630, 0.0
  %v634 = vmax.f32 %v631, 0.0
  %v635 = vmul.f32 %v632, %v40
  %v636 = vmul.f32 %v633, %v44
  %v637 = vmul.f32 %v634, %v48
  %s638 = scalar_lea.vmem %s2, 64
  %v639 = vld [vmem:[%s638] sm:$0xff]
  %v640 = vld [vmem:[%s638 + $0x8] sm:$0xff]
  %v641 = vld [vmem:[%s638 + $0x10] sm:$0xff]
  %v642 = vld [vmem:[%s638 + $0x18] sm:$0xff]
  %v643 = vld [vmem:[%s638 + $0x20] sm:$0xff]
  %v644 = vld [vmem:[%s638 + $0x28] sm:$0xff]
  %v645 = vld [vmem:[%s638 + $0x30] sm:$0xff]
  %v646 = vld [vmem:[%s638 + $0x38] sm:$0xff]
  %s647 = scalar_lea.vmem %s3, 8
  %v648 = vld [vmem:[%s647] sm:$0xff]
  %650 = vset.pattern.permute.xlu0 0
  %651 = vperm.xlu0 %650, %v648
  %v652 = vpop.permute.xlu0 %651
  %655 = vset.pattern.permute.xlu0 0
  %656 = vperm.xlu0 %655, %v639
  %v657 = vpop.permute.xlu0 %656
  %v659 = vlaneseq
  %v660 = vshrl.u32 %v659, 7
  %v661 = vsub.s32 0, %v660
  %v662 = vrot.slane %v635, %v661
  %v663 = vlaneseq
  %v664 = vshrl.u32 %v663, 7
  %v665 = vsub.s32 0, %v664
  %v666 = vrot.slane %v636, %v665
  %v667 = vlaneseq
  %v668 = vshrl.u32 %v667, 7
  %v669 = vsub.s32 0, %v668
  %v670 = vrot.slane %v637, %v669
  %v671 = vmul.f32 %v657, %v662
  %v672 = vmul.f32 %v657, %v666
  %v673 = vmul.f32 %v657, %v670
  %v674 = vadd.f32 %v652, %v671
  %v675 = vadd.f32 %v652, %v672
  %v676 = vadd.f32 %v652, %v673
  %678 = vset.pattern.permute.xlu0 0
  %679 = vperm.xlu0 %678, %v640
  %v680 = vpop.permute.xlu0 %679
  %v682 = vlaneseq
  %v683 = vshrl.u32 %v682, 7
  %v684 = vsub.s32 1, %v683
  %v685 = vrot.slane %v635, %v684
  %v686 = vlaneseq
  %v687 = vshrl.u32 %v686, 7
  %v688 = vsub.s32 1, %v687
  %v689 = vrot.slane %v636, %v688
  %v690 = vlaneseq
  %v691 = vshrl.u32 %v690, 7
  %v692 = vsub.s32 1, %v691
  %v693 = vrot.slane %v637, %v692
  %v694 = vmul.f32 %v680, %v685
  %v695 = vmul.f32 %v680, %v689
  %v696 = vmul.f32 %v680, %v693
  %v697 = vadd.f32 %v674, %v694
  %v698 = vadd.f32 %v675, %v695
  %v699 = vadd.f32 %v676, %v696
  %701 = vset.pattern.permute.xlu0 0
  %702 = vperm.xlu0 %701, %v641
  %v703 = vpop.permute.xlu0 %702
  %v705 = vlaneseq
  %v706 = vshrl.u32 %v705, 7
  %v707 = vsub.s32 2, %v706
  %v708 = vrot.slane %v635, %v707
  %v709 = vlaneseq
  %v710 = vshrl.u32 %v709, 7
  %v711 = vsub.s32 2, %v710
  %v712 = vrot.slane %v636, %v711
  %v713 = vlaneseq
  %v714 = vshrl.u32 %v713, 7
  %v715 = vsub.s32 2, %v714
  %v716 = vrot.slane %v637, %v715
  %v717 = vmul.f32 %v703, %v708
  %v718 = vmul.f32 %v703, %v712
  %v719 = vmul.f32 %v703, %v716
  %v720 = vadd.f32 %v697, %v717
  %v721 = vadd.f32 %v698, %v718
  %v722 = vadd.f32 %v699, %v719
  %724 = vset.pattern.permute.xlu0 0
  %725 = vperm.xlu0 %724, %v642
  %v726 = vpop.permute.xlu0 %725
  %v728 = vlaneseq
  %v729 = vshrl.u32 %v728, 7
  %v730 = vsub.s32 3, %v729
  %v731 = vrot.slane %v635, %v730
  %v732 = vlaneseq
  %v733 = vshrl.u32 %v732, 7
  %v734 = vsub.s32 3, %v733
  %v735 = vrot.slane %v636, %v734
  %v736 = vlaneseq
  %v737 = vshrl.u32 %v736, 7
  %v738 = vsub.s32 3, %v737
  %v739 = vrot.slane %v637, %v738
  %v740 = vmul.f32 %v726, %v731
  %v741 = vmul.f32 %v726, %v735
  %v742 = vmul.f32 %v726, %v739
  %v743 = vadd.f32 %v720, %v740
  %v744 = vadd.f32 %v721, %v741
  %v745 = vadd.f32 %v722, %v742
  %747 = vset.pattern.permute.xlu0 0
  %748 = vperm.xlu0 %747, %v643
  %v749 = vpop.permute.xlu0 %748
  %v751 = vlaneseq
  %v752 = vshrl.u32 %v751, 7
  %v753 = vsub.s32 4, %v752
  %v754 = vrot.slane %v635, %v753
  %v755 = vlaneseq
  %v756 = vshrl.u32 %v755, 7
  %v757 = vsub.s32 4, %v756
  %v758 = vrot.slane %v636, %v757
  %v759 = vlaneseq
  %v760 = vshrl.u32 %v759, 7
  %v761 = vsub.s32 4, %v760
  %v762 = vrot.slane %v637, %v761
  %v763 = vmul.f32 %v749, %v754
  %v764 = vmul.f32 %v749, %v758
  %v765 = vmul.f32 %v749, %v762
  %v766 = vadd.f32 %v743, %v763
  %v767 = vadd.f32 %v744, %v764
  %v768 = vadd.f32 %v745, %v765
  %770 = vset.pattern.permute.xlu0 0
  %771 = vperm.xlu0 %770, %v644
  %v772 = vpop.permute.xlu0 %771
  %v774 = vlaneseq
  %v775 = vshrl.u32 %v774, 7
  %v776 = vsub.s32 5, %v775
  %v777 = vrot.slane %v635, %v776
  %v778 = vlaneseq
  %v779 = vshrl.u32 %v778, 7
  %v780 = vsub.s32 5, %v779
  %v781 = vrot.slane %v636, %v780
  %v782 = vlaneseq
  %v783 = vshrl.u32 %v782, 7
  %v784 = vsub.s32 5, %v783
  %v785 = vrot.slane %v637, %v784
  %v786 = vmul.f32 %v772, %v777
  %v787 = vmul.f32 %v772, %v781
  %v788 = vmul.f32 %v772, %v785
  %v789 = vadd.f32 %v766, %v786
  %v790 = vadd.f32 %v767, %v787
  %v791 = vadd.f32 %v768, %v788
  %793 = vset.pattern.permute.xlu0 0
  %794 = vperm.xlu0 %793, %v645
  %v795 = vpop.permute.xlu0 %794
  %v797 = vlaneseq
  %v798 = vshrl.u32 %v797, 7
  %v799 = vsub.s32 6, %v798
  %v800 = vrot.slane %v635, %v799
  %v801 = vlaneseq
  %v802 = vshrl.u32 %v801, 7
  %v803 = vsub.s32 6, %v802
  %v804 = vrot.slane %v636, %v803
  %v805 = vlaneseq
  %v806 = vshrl.u32 %v805, 7
  %v807 = vsub.s32 6, %v806
  %v808 = vrot.slane %v637, %v807
  %v809 = vmul.f32 %v795, %v800
  %v810 = vmul.f32 %v795, %v804
  %v811 = vmul.f32 %v795, %v808
  %v812 = vadd.f32 %v789, %v809
  %v813 = vadd.f32 %v790, %v810
  %v814 = vadd.f32 %v791, %v811
  %816 = vset.pattern.permute.xlu0 0
  %817 = vperm.xlu0 %816, %v646
  %v818 = vpop.permute.xlu0 %817
  %v820 = vlaneseq
  %v821 = vshrl.u32 %v820, 7
  %v822 = vsub.s32 7, %v821
  %v823 = vrot.slane %v635, %v822
  %v824 = vlaneseq
  %v825 = vshrl.u32 %v824, 7
  %v826 = vsub.s32 7, %v825
  %v827 = vrot.slane %v636, %v826
  %v828 = vlaneseq
  %v829 = vshrl.u32 %v828, 7
  %v830 = vsub.s32 7, %v829
  %v831 = vrot.slane %v637, %v830
  %v832 = vmul.f32 %v818, %v823
  %v833 = vmul.f32 %v818, %v827
  %v834 = vmul.f32 %v818, %v831
  %v835 = vadd.f32 %v812, %v832
  %v836 = vadd.f32 %v813, %v833
  %v837 = vadd.f32 %v814, %v834
  %v838 = vmax.f32 %v835, 0.0
  %v839 = vmax.f32 %v836, 0.0
  %v840 = vmax.f32 %v837, 0.0
  %v841 = vmul.f32 %v838, %v40
  %v842 = vmul.f32 %v839, %v44
  %v843 = vmul.f32 %v840, %v48
  %s844 = scalar_lea.vmem %s4, 72
  %v845 = vld [vmem:[%s844] sm:$0xff]
  %v846 = vld [vmem:[%s844 + $0x8] sm:$0xff]
  %v847 = vld [vmem:[%s844 + $0x10] sm:$0xff]
  %v848 = vld [vmem:[%s844 + $0x18] sm:$0xff]
  %v849 = vld [vmem:[%s844 + $0x20] sm:$0xff]
  %v850 = vld [vmem:[%s844 + $0x28] sm:$0xff]
  %v851 = vld [vmem:[%s844 + $0x30] sm:$0xff]
  %v852 = vld [vmem:[%s844 + $0x38] sm:$0xff]
  %v853 = vld [vmem:[%s844 + $0x40] sm:$0xff]
  %s854 = scalar_lea.vmem %s5, 72
  %v855 = vld [vmem:[%s854] sm:$0xff]
  %v856 = vld [vmem:[%s854 + $0x8] sm:$0xff]
  %v857 = vld [vmem:[%s854 + $0x10] sm:$0xff]
  %v858 = vld [vmem:[%s854 + $0x18] sm:$0xff]
  %v859 = vld [vmem:[%s854 + $0x20] sm:$0xff]
  %v860 = vld [vmem:[%s854 + $0x28] sm:$0xff]
  %v861 = vld [vmem:[%s854 + $0x30] sm:$0xff]
  %v862 = vld [vmem:[%s854 + $0x38] sm:$0xff]
  %v863 = vld [vmem:[%s854 + $0x40] sm:$0xff]
  %s864 = scalar_lea.vmem %s6, 8
  %v865 = vld [vmem:[%s864] sm:$0xff]
  %867 = vset.pattern.permute.xlu0 0
  %868 = vperm.xlu0 %867, %v865
  %v869 = vpop.permute.xlu0 %868
  %871 = vrot.lane.b32.xlu0 %v841, 19
  %v872 = vpop.permute.xlu0 %871
  %873 = vrot.lane.b32.xlu0 %v842, 19
  %v874 = vpop.permute.xlu0 %873
  %875 = vrot.lane.b32.xlu0 %v843, 19
  %v876 = vpop.permute.xlu0 %875
  %v877 = vsel %vm288, %v874, %v876
  %v878 = vsel %vm288, %v872, %v874
  %v879 = vsel %vm288, %v876, %v872
  %880 = vrot.lane.b32.xlu0 %v635, 19
  %v881 = vpop.permute.xlu0 %880
  %882 = vrot.lane.b32.xlu0 %v636, 19
  %v883 = vpop.permute.xlu0 %882
  %884 = vrot.lane.b32.xlu0 %v637, 19
  %v885 = vpop.permute.xlu0 %884
  %v886 = vsel %vm288, %v883, %v885
  %v887 = vsel %vm288, %v881, %v883
  %v888 = vsel %vm288, %v885, %v881
  %890 = vset.pattern.permute.xlu0 0
  %891 = vperm.xlu0 %890, %v845
  %v892 = vpop.permute.xlu0 %891
  %v894 = vmul.f32 %v879, %v892
  %v895 = vmul.f32 %v878, %v892
  %v896 = vmul.f32 %v877, %v892
  %v897 = vadd.f32 %v869, %v894
  %v898 = vadd.f32 %v869, %v895
  %v899 = vadd.f32 %v869, %v896
  %901 = vset.pattern.permute.xlu0 0
  %902 = vperm.xlu0 %901, %v855
  %v903 = vpop.permute.xlu0 %902
  %v905 = vmul.f32 %v888, %v903
  %v906 = vmul.f32 %v887, %v903
  %v907 = vmul.f32 %v886, %v903
  %v908 = vadd.f32 %v897, %v905
  %v909 = vadd.f32 %v898, %v906
  %v910 = vadd.f32 %v899, %v907
  %911 = vrot.lane.b32.xlu0 %v841, 18
  %v912 = vpop.permute.xlu0 %911
  %913 = vrot.lane.b32.xlu0 %v842, 18
  %v914 = vpop.permute.xlu0 %913
  %915 = vrot.lane.b32.xlu0 %v843, 18
  %v916 = vpop.permute.xlu0 %915
  %v917 = vsel %vm329, %v914, %v916
  %v918 = vsel %vm329, %v912, %v914
  %v919 = vsel %vm329, %v916, %v912
  %920 = vrot.lane.b32.xlu0 %v635, 18
  %v921 = vpop.permute.xlu0 %920
  %922 = vrot.lane.b32.xlu0 %v636, 18
  %v923 = vpop.permute.xlu0 %922
  %924 = vrot.lane.b32.xlu0 %v637, 18
  %v925 = vpop.permute.xlu0 %924
  %v926 = vsel %vm329, %v923, %v925
  %v927 = vsel %vm329, %v921, %v923
  %v928 = vsel %vm329, %v925, %v921
  %930 = vset.pattern.permute.xlu0 0
  %931 = vperm.xlu0 %930, %v846
  %v932 = vpop.permute.xlu0 %931
  %v934 = vmul.f32 %v919, %v932
  %v935 = vmul.f32 %v918, %v932
  %v936 = vmul.f32 %v917, %v932
  %v937 = vadd.f32 %v908, %v934
  %v938 = vadd.f32 %v909, %v935
  %v939 = vadd.f32 %v910, %v936
  %941 = vset.pattern.permute.xlu0 0
  %942 = vperm.xlu0 %941, %v856
  %v943 = vpop.permute.xlu0 %942
  %v945 = vmul.f32 %v928, %v943
  %v946 = vmul.f32 %v927, %v943
  %v947 = vmul.f32 %v926, %v943
  %v948 = vadd.f32 %v937, %v945
  %v949 = vadd.f32 %v938, %v946
  %v950 = vadd.f32 %v939, %v947
  %951 = vrot.lane.b32.xlu0 %v841, 17
  %v952 = vpop.permute.xlu0 %951
  %953 = vrot.lane.b32.xlu0 %v842, 17
  %v954 = vpop.permute.xlu0 %953
  %955 = vrot.lane.b32.xlu0 %v843, 17
  %v956 = vpop.permute.xlu0 %955
  %v957 = vsel %vm370, %v954, %v956
  %v958 = vsel %vm370, %v952, %v954
  %v959 = vsel %vm370, %v956, %v952
  %960 = vrot.lane.b32.xlu0 %v635, 17
  %v961 = vpop.permute.xlu0 %960
  %962 = vrot.lane.b32.xlu0 %v636, 17
  %v963 = vpop.permute.xlu0 %962
  %964 = vrot.lane.b32.xlu0 %v637, 17
  %v965 = vpop.permute.xlu0 %964
  %v966 = vsel %vm370, %v963, %v965
  %v967 = vsel %vm370, %v961, %v963
  %v968 = vsel %vm370, %v965, %v961
  %970 = vset.pattern.permute.xlu0 0
  %971 = vperm.xlu0 %970, %v847
  %v972 = vpop.permute.xlu0 %971
  %v974 = vmul.f32 %v959, %v972
  %v975 = vmul.f32 %v958, %v972
  %v976 = vmul.f32 %v957, %v972
  %v977 = vadd.f32 %v948, %v974
  %v978 = vadd.f32 %v949, %v975
  %v979 = vadd.f32 %v950, %v976
  %981 = vset.pattern.permute.xlu0 0
  %982 = vperm.xlu0 %981, %v857
  %v983 = vpop.permute.xlu0 %982
  %v985 = vmul.f32 %v968, %v983
  %v986 = vmul.f32 %v967, %v983
  %v987 = vmul.f32 %v966, %v983
  %v988 = vadd.f32 %v977, %v985
  %v989 = vadd.f32 %v978, %v986
  %v990 = vadd.f32 %v979, %v987
  %991 = vrot.lane.b32.xlu0 %v841, 1
  %v992 = vpop.permute.xlu0 %991
  %993 = vrot.lane.b32.xlu0 %v842, 1
  %v994 = vpop.permute.xlu0 %993
  %995 = vrot.lane.b32.xlu0 %v843, 1
  %v996 = vpop.permute.xlu0 %995
  %v997 = vsel %vm411, %v994, %v996
  %v998 = vsel %vm411, %v992, %v994
  %v999 = vsel %vm411, %v996, %v992
  %1000 = vrot.lane.b32.xlu0 %v635, 1
  %v1001 = vpop.permute.xlu0 %1000
  %1002 = vrot.lane.b32.xlu0 %v636, 1
  %v1003 = vpop.permute.xlu0 %1002
  %1004 = vrot.lane.b32.xlu0 %v637, 1
  %v1005 = vpop.permute.xlu0 %1004
  %v1006 = vsel %vm411, %v1003, %v1005
  %v1007 = vsel %vm411, %v1001, %v1003
  %v1008 = vsel %vm411, %v1005, %v1001
  %1010 = vset.pattern.permute.xlu0 0
  %1011 = vperm.xlu0 %1010, %v848
  %v1012 = vpop.permute.xlu0 %1011
  %v1014 = vmul.f32 %v999, %v1012
  %v1015 = vmul.f32 %v998, %v1012
  %v1016 = vmul.f32 %v997, %v1012
  %v1017 = vadd.f32 %v988, %v1014
  %v1018 = vadd.f32 %v989, %v1015
  %v1019 = vadd.f32 %v990, %v1016
  %1021 = vset.pattern.permute.xlu0 0
  %1022 = vperm.xlu0 %1021, %v858
  %v1023 = vpop.permute.xlu0 %1022
  %v1025 = vmul.f32 %v1008, %v1023
  %v1026 = vmul.f32 %v1007, %v1023
  %v1027 = vmul.f32 %v1006, %v1023
  %v1028 = vadd.f32 %v1017, %v1025
  %v1029 = vadd.f32 %v1018, %v1026
  %v1030 = vadd.f32 %v1019, %v1027
  %1032 = vset.pattern.permute.xlu0 0
  %1033 = vperm.xlu0 %1032, %v849
  %v1034 = vpop.permute.xlu0 %1033
  %v1036 = vmul.f32 %v841, %v1034
  %v1037 = vmul.f32 %v842, %v1034
  %v1038 = vmul.f32 %v843, %v1034
  %v1039 = vadd.f32 %v1028, %v1036
  %v1040 = vadd.f32 %v1029, %v1037
  %v1041 = vadd.f32 %v1030, %v1038
  %1043 = vset.pattern.permute.xlu0 0
  %1044 = vperm.xlu0 %1043, %v859
  %v1045 = vpop.permute.xlu0 %1044
  %v1047 = vmul.f32 %v635, %v1045
  %v1048 = vmul.f32 %v636, %v1045
  %v1049 = vmul.f32 %v637, %v1045
  %v1050 = vadd.f32 %v1039, %v1047
  %v1051 = vadd.f32 %v1040, %v1048
  %v1052 = vadd.f32 %v1041, %v1049
  %1053 = vrot.lane.b32.xlu0 %v841, 127
  %v1054 = vpop.permute.xlu0 %1053
  %1055 = vrot.lane.b32.xlu0 %v842, 127
  %v1056 = vpop.permute.xlu0 %1055
  %1057 = vrot.lane.b32.xlu0 %v843, 127
  %v1058 = vpop.permute.xlu0 %1057
  %v1059 = vsel %vm474, %v1056, %v1058
  %v1060 = vsel %vm474, %v1054, %v1056
  %v1061 = vsel %vm474, %v1058, %v1054
  %1062 = vrot.lane.b32.xlu0 %v635, 127
  %v1063 = vpop.permute.xlu0 %1062
  %1064 = vrot.lane.b32.xlu0 %v636, 127
  %v1065 = vpop.permute.xlu0 %1064
  %1066 = vrot.lane.b32.xlu0 %v637, 127
  %v1067 = vpop.permute.xlu0 %1066
  %v1068 = vsel %vm474, %v1065, %v1067
  %v1069 = vsel %vm474, %v1063, %v1065
  %v1070 = vsel %vm474, %v1067, %v1063
  %1072 = vset.pattern.permute.xlu0 0
  %1073 = vperm.xlu0 %1072, %v850
  %v1074 = vpop.permute.xlu0 %1073
  %v1076 = vmul.f32 %v1060, %v1074
  %v1077 = vmul.f32 %v1059, %v1074
  %v1078 = vmul.f32 %v1061, %v1074
  %v1079 = vadd.f32 %v1050, %v1076
  %v1080 = vadd.f32 %v1051, %v1077
  %v1081 = vadd.f32 %v1052, %v1078
  %1083 = vset.pattern.permute.xlu0 0
  %1084 = vperm.xlu0 %1083, %v860
  %v1085 = vpop.permute.xlu0 %1084
  %v1087 = vmul.f32 %v1069, %v1085
  %v1088 = vmul.f32 %v1068, %v1085
  %v1089 = vmul.f32 %v1070, %v1085
  %v1090 = vadd.f32 %v1079, %v1087
  %v1091 = vadd.f32 %v1080, %v1088
  %v1092 = vadd.f32 %v1081, %v1089
  %1093 = vrot.lane.b32.xlu0 %v841, 111
  %v1094 = vpop.permute.xlu0 %1093
  %1095 = vrot.lane.b32.xlu0 %v842, 111
  %v1096 = vpop.permute.xlu0 %1095
  %1097 = vrot.lane.b32.xlu0 %v843, 111
  %v1098 = vpop.permute.xlu0 %1097
  %v1099 = vsel %vm515, %v1096, %v1098
  %v1100 = vsel %vm515, %v1094, %v1096
  %v1101 = vsel %vm515, %v1098, %v1094
  %1102 = vrot.lane.b32.xlu0 %v635, 111
  %v1103 = vpop.permute.xlu0 %1102
  %1104 = vrot.lane.b32.xlu0 %v636, 111
  %v1105 = vpop.permute.xlu0 %1104
  %1106 = vrot.lane.b32.xlu0 %v637, 111
  %v1107 = vpop.permute.xlu0 %1106
  %v1108 = vsel %vm515, %v1105, %v1107
  %v1109 = vsel %vm515, %v1103, %v1105
  %v1110 = vsel %vm515, %v1107, %v1103
  %1112 = vset.pattern.permute.xlu0 0
  %1113 = vperm.xlu0 %1112, %v851
  %v1114 = vpop.permute.xlu0 %1113
  %v1116 = vmul.f32 %v1100, %v1114
  %v1117 = vmul.f32 %v1099, %v1114
  %v1118 = vmul.f32 %v1101, %v1114
  %v1119 = vadd.f32 %v1090, %v1116
  %v1120 = vadd.f32 %v1091, %v1117
  %v1121 = vadd.f32 %v1092, %v1118
  %1123 = vset.pattern.permute.xlu0 0
  %1124 = vperm.xlu0 %1123, %v861
  %v1125 = vpop.permute.xlu0 %1124
  %v1127 = vmul.f32 %v1109, %v1125
  %v1128 = vmul.f32 %v1108, %v1125
  %v1129 = vmul.f32 %v1110, %v1125
  %v1130 = vadd.f32 %v1119, %v1127
  %v1131 = vadd.f32 %v1120, %v1128
  %v1132 = vadd.f32 %v1121, %v1129
  %1133 = vrot.lane.b32.xlu0 %v841, 110
  %v1134 = vpop.permute.xlu0 %1133
  %1135 = vrot.lane.b32.xlu0 %v842, 110
  %v1136 = vpop.permute.xlu0 %1135
  %1137 = vrot.lane.b32.xlu0 %v843, 110
  %v1138 = vpop.permute.xlu0 %1137
  %v1139 = vsel %vm556, %v1136, %v1138
  %v1140 = vsel %vm556, %v1134, %v1136
  %v1141 = vsel %vm556, %v1138, %v1134
  %1142 = vrot.lane.b32.xlu0 %v635, 110
  %v1143 = vpop.permute.xlu0 %1142
  %1144 = vrot.lane.b32.xlu0 %v636, 110
  %v1145 = vpop.permute.xlu0 %1144
  %1146 = vrot.lane.b32.xlu0 %v637, 110
  %v1147 = vpop.permute.xlu0 %1146
  %v1148 = vsel %vm556, %v1145, %v1147
  %v1149 = vsel %vm556, %v1143, %v1145
  %v1150 = vsel %vm556, %v1147, %v1143
  %1152 = vset.pattern.permute.xlu0 0
  %1153 = vperm.xlu0 %1152, %v852
  %v1154 = vpop.permute.xlu0 %1153
  %v1156 = vmul.f32 %v1140, %v1154
  %v1157 = vmul.f32 %v1139, %v1154
  %v1158 = vmul.f32 %v1141, %v1154
  %v1159 = vadd.f32 %v1130, %v1156
  %v1160 = vadd.f32 %v1131, %v1157
  %v1161 = vadd.f32 %v1132, %v1158
  %1163 = vset.pattern.permute.xlu0 0
  %1164 = vperm.xlu0 %1163, %v862
  %v1165 = vpop.permute.xlu0 %1164
  %v1167 = vmul.f32 %v1149, %v1165
  %v1168 = vmul.f32 %v1148, %v1165
  %v1169 = vmul.f32 %v1150, %v1165
  %v1170 = vadd.f32 %v1159, %v1167
  %v1171 = vadd.f32 %v1160, %v1168
  %v1172 = vadd.f32 %v1161, %v1169
  %1173 = vrot.lane.b32.xlu0 %v841, 109
  %v1174 = vpop.permute.xlu0 %1173
  %1175 = vrot.lane.b32.xlu0 %v842, 109
  %v1176 = vpop.permute.xlu0 %1175
  %1177 = vrot.lane.b32.xlu0 %v843, 109
  %v1178 = vpop.permute.xlu0 %1177
  %v1179 = vsel %vm597, %v1176, %v1178
  %v1180 = vsel %vm597, %v1174, %v1176
  %v1181 = vsel %vm597, %v1178, %v1174
  %1182 = vrot.lane.b32.xlu0 %v635, 109
  %v1183 = vpop.permute.xlu0 %1182
  %1184 = vrot.lane.b32.xlu0 %v636, 109
  %v1185 = vpop.permute.xlu0 %1184
  %1186 = vrot.lane.b32.xlu0 %v637, 109
  %v1187 = vpop.permute.xlu0 %1186
  %v1188 = vsel %vm597, %v1185, %v1187
  %v1189 = vsel %vm597, %v1183, %v1185
  %v1190 = vsel %vm597, %v1187, %v1183
  %1192 = vset.pattern.permute.xlu0 0
  %1193 = vperm.xlu0 %1192, %v853
  %v1194 = vpop.permute.xlu0 %1193
  %v1196 = vmul.f32 %v1180, %v1194
  %v1197 = vmul.f32 %v1179, %v1194
  %v1198 = vmul.f32 %v1181, %v1194
  %v1199 = vadd.f32 %v1170, %v1196
  %v1200 = vadd.f32 %v1171, %v1197
  %v1201 = vadd.f32 %v1172, %v1198
  %1203 = vset.pattern.permute.xlu0 0
  %1204 = vperm.xlu0 %1203, %v863
  %v1205 = vpop.permute.xlu0 %1204
  %v1207 = vmul.f32 %v1189, %v1205
  %v1208 = vmul.f32 %v1188, %v1205
  %v1209 = vmul.f32 %v1190, %v1205
  %v1210 = vadd.f32 %v1199, %v1207
  %v1211 = vadd.f32 %v1200, %v1208
  %v1212 = vadd.f32 %v1201, %v1209
  %v1213 = vmax.f32 %v1210, 0.0
  %v1214 = vmax.f32 %v1211, 0.0
  %v1215 = vmax.f32 %v1212, 0.0
  %v1216 = vmul.f32 %v1213, %v40
  %v1217 = vmul.f32 %v1214, %v44
  %v1218 = vmul.f32 %v1215, %v48
  %v1219 = vld [vmem:[%s7] sm:$0xff]
  %v1220 = vld [vmem:[%s7 + $0x8] sm:$0xff]
  %v1221 = vld [vmem:[%s7 + $0x10] sm:$0xff]
  %v1222 = vld [vmem:[%s7 + $0x18] sm:$0xff]
  %v1223 = vld [vmem:[%s7 + $0x20] sm:$0xff]
  %v1224 = vld [vmem:[%s7 + $0x28] sm:$0xff]
  %v1225 = vld [vmem:[%s7 + $0x30] sm:$0xff]
  %v1226 = vld [vmem:[%s7 + $0x38] sm:$0xff]
  %v1227 = vld [vmem:[%s8] sm:$0xff]
  %1229 = vset.pattern.permute.xlu0 0
  %1230 = vperm.xlu0 %1229, %v1227
  %v1231 = vpop.permute.xlu0 %1230
  %1234 = vset.pattern.permute.xlu0 0
  %1235 = vperm.xlu0 %1234, %v1219
  %v1236 = vpop.permute.xlu0 %1235
  %v1238 = vlaneseq
  %v1239 = vshrl.u32 %v1238, 7
  %v1240 = vsub.s32 0, %v1239
  %v1241 = vrot.slane %v1216, %v1240
  %v1242 = vlaneseq
  %v1243 = vshrl.u32 %v1242, 7
  %v1244 = vsub.s32 0, %v1243
  %v1245 = vrot.slane %v1217, %v1244
  %v1246 = vlaneseq
  %v1247 = vshrl.u32 %v1246, 7
  %v1248 = vsub.s32 0, %v1247
  %v1249 = vrot.slane %v1218, %v1248
  %v1250 = vmul.f32 %v1236, %v1241
  %v1251 = vmul.f32 %v1236, %v1245
  %v1252 = vmul.f32 %v1236, %v1249
  %v1253 = vadd.f32 %v1231, %v1250
  %v1254 = vadd.f32 %v1231, %v1251
  %v1255 = vadd.f32 %v1231, %v1252
  %1257 = vset.pattern.permute.xlu0 0
  %1258 = vperm.xlu0 %1257, %v1220
  %v1259 = vpop.permute.xlu0 %1258
  %v1261 = vlaneseq
  %v1262 = vshrl.u32 %v1261, 7
  %v1263 = vsub.s32 1, %v1262
  %v1264 = vrot.slane %v1216, %v1263
  %v1265 = vlaneseq
  %v1266 = vshrl.u32 %v1265, 7
  %v1267 = vsub.s32 1, %v1266
  %v1268 = vrot.slane %v1217, %v1267
  %v1269 = vlaneseq
  %v1270 = vshrl.u32 %v1269, 7
  %v1271 = vsub.s32 1, %v1270
  %v1272 = vrot.slane %v1218, %v1271
  %v1273 = vmul.f32 %v1259, %v1264
  %v1274 = vmul.f32 %v1259, %v1268
  %v1275 = vmul.f32 %v1259, %v1272
  %v1276 = vadd.f32 %v1253, %v1273
  %v1277 = vadd.f32 %v1254, %v1274
  %v1278 = vadd.f32 %v1255, %v1275
  %1280 = vset.pattern.permute.xlu0 0
  %1281 = vperm.xlu0 %1280, %v1221
  %v1282 = vpop.permute.xlu0 %1281
  %v1284 = vlaneseq
  %v1285 = vshrl.u32 %v1284, 7
  %v1286 = vsub.s32 2, %v1285
  %v1287 = vrot.slane %v1216, %v1286
  %v1288 = vlaneseq
  %v1289 = vshrl.u32 %v1288, 7
  %v1290 = vsub.s32 2, %v1289
  %v1291 = vrot.slane %v1217, %v1290
  %v1292 = vlaneseq
  %v1293 = vshrl.u32 %v1292, 7
  %v1294 = vsub.s32 2, %v1293
  %v1295 = vrot.slane %v1218, %v1294
  %v1296 = vmul.f32 %v1282, %v1287
  %v1297 = vmul.f32 %v1282, %v1291
  %v1298 = vmul.f32 %v1282, %v1295
  %v1299 = vadd.f32 %v1276, %v1296
  %v1300 = vadd.f32 %v1277, %v1297
  %v1301 = vadd.f32 %v1278, %v1298
  %1303 = vset.pattern.permute.xlu0 0
  %1304 = vperm.xlu0 %1303, %v1222
  %v1305 = vpop.permute.xlu0 %1304
  %v1307 = vlaneseq
  %v1308 = vshrl.u32 %v1307, 7
  %v1309 = vsub.s32 3, %v1308
  %v1310 = vrot.slane %v1216, %v1309
  %v1311 = vlaneseq
  %v1312 = vshrl.u32 %v1311, 7
  %v1313 = vsub.s32 3, %v1312
  %v1314 = vrot.slane %v1217, %v1313
  %v1315 = vlaneseq
  %v1316 = vshrl.u32 %v1315, 7
  %v1317 = vsub.s32 3, %v1316
  %v1318 = vrot.slane %v1218, %v1317
  %v1319 = vmul.f32 %v1305, %v1310
  %v1320 = vmul.f32 %v1305, %v1314
  %v1321 = vmul.f32 %v1305, %v1318
  %v1322 = vadd.f32 %v1299, %v1319
  %v1323 = vadd.f32 %v1300, %v1320
  %v1324 = vadd.f32 %v1301, %v1321
  %1326 = vset.pattern.permute.xlu0 0
  %1327 = vperm.xlu0 %1326, %v1223
  %v1328 = vpop.permute.xlu0 %1327
  %v1330 = vlaneseq
  %v1331 = vshrl.u32 %v1330, 7
  %v1332 = vsub.s32 4, %v1331
  %v1333 = vrot.slane %v1216, %v1332
  %v1334 = vlaneseq
  %v1335 = vshrl.u32 %v1334, 7
  %v1336 = vsub.s32 4, %v1335
  %v1337 = vrot.slane %v1217, %v1336
  %v1338 = vlaneseq
  %v1339 = vshrl.u32 %v1338, 7
  %v1340 = vsub.s32 4, %v1339
  %v1341 = vrot.slane %v1218, %v1340
  %v1342 = vmul.f32 %v1328, %v1333
  %v1343 = vmul.f32 %v1328, %v1337
  %v1344 = vmul.f32 %v1328, %v1341
  %v1345 = vadd.f32 %v1322, %v1342
  %v1346 = vadd.f32 %v1323, %v1343
  %v1347 = vadd.f32 %v1324, %v1344
  %1349 = vset.pattern.permute.xlu0 0
  %1350 = vperm.xlu0 %1349, %v1224
  %v1351 = vpop.permute.xlu0 %1350
  %v1353 = vlaneseq
  %v1354 = vshrl.u32 %v1353, 7
  %v1355 = vsub.s32 5, %v1354
  %v1356 = vrot.slane %v1216, %v1355
  %v1357 = vlaneseq
  %v1358 = vshrl.u32 %v1357, 7
  %v1359 = vsub.s32 5, %v1358
  %v1360 = vrot.slane %v1217, %v1359
  %v1361 = vlaneseq
  %v1362 = vshrl.u32 %v1361, 7
  %v1363 = vsub.s32 5, %v1362
  %v1364 = vrot.slane %v1218, %v1363
  %v1365 = vmul.f32 %v1351, %v1356
  %v1366 = vmul.f32 %v1351, %v1360
  %v1367 = vmul.f32 %v1351, %v1364
  %v1368 = vadd.f32 %v1345, %v1365
  %v1369 = vadd.f32 %v1346, %v1366
  %v1370 = vadd.f32 %v1347, %v1367
  %1372 = vset.pattern.permute.xlu0 0
  %1373 = vperm.xlu0 %1372, %v1225
  %v1374 = vpop.permute.xlu0 %1373
  %v1376 = vlaneseq
  %v1377 = vshrl.u32 %v1376, 7
  %v1378 = vsub.s32 6, %v1377
  %v1379 = vrot.slane %v1216, %v1378
  %v1380 = vlaneseq
  %v1381 = vshrl.u32 %v1380, 7
  %v1382 = vsub.s32 6, %v1381
  %v1383 = vrot.slane %v1217, %v1382
  %v1384 = vlaneseq
  %v1385 = vshrl.u32 %v1384, 7
  %v1386 = vsub.s32 6, %v1385
  %v1387 = vrot.slane %v1218, %v1386
  %v1388 = vmul.f32 %v1374, %v1379
  %v1389 = vmul.f32 %v1374, %v1383
  %v1390 = vmul.f32 %v1374, %v1387
  %v1391 = vadd.f32 %v1368, %v1388
  %v1392 = vadd.f32 %v1369, %v1389
  %v1393 = vadd.f32 %v1370, %v1390
  %1395 = vset.pattern.permute.xlu0 0
  %1396 = vperm.xlu0 %1395, %v1226
  %v1397 = vpop.permute.xlu0 %1396
  %v1399 = vlaneseq
  %v1400 = vshrl.u32 %v1399, 7
  %v1401 = vsub.s32 7, %v1400
  %v1402 = vrot.slane %v1216, %v1401
  %v1403 = vlaneseq
  %v1404 = vshrl.u32 %v1403, 7
  %v1405 = vsub.s32 7, %v1404
  %v1406 = vrot.slane %v1217, %v1405
  %v1407 = vlaneseq
  %v1408 = vshrl.u32 %v1407, 7
  %v1409 = vsub.s32 7, %v1408
  %v1410 = vrot.slane %v1218, %v1409
  %v1411 = vmul.f32 %v1397, %v1402
  %v1412 = vmul.f32 %v1397, %v1406
  %v1413 = vmul.f32 %v1397, %v1410
  %v1414 = vadd.f32 %v1391, %v1411
  %v1415 = vadd.f32 %v1392, %v1412
  %v1416 = vadd.f32 %v1393, %v1413
  %v1417 = vmax.f32 %v1414, 0.0
  %v1418 = vmax.f32 %v1415, 0.0
  %v1419 = vmax.f32 %v1416, 0.0
  %v1420 = vmul.f32 %v1417, %v40
  %v1421 = vmul.f32 %v1418, %v44
  %v1422 = vmul.f32 %v1419, %v48
  %1423 = vst [vmem:[%s9] sm:$0xff] %v1420
  %1424 = vst [vmem:[%s9 + $0x8] sm:$0xff] %v1421
  %1425 = vst [vmem:[%s9 + $0x10] sm:$0xff] %v1422
  // Predicated region
  $region38: #{_lambda_.1} parent=0 // pred_check
    _
  $region39: #{_lambda_.1} parent=0 // pred_check_branch
    %1427 = sbr.rel (0) target = $region41
  $region40: #{_lambda_.1} parent=0 // pred_region
    _
  $region41: #{_lambda_.1} parent=0 // pred_fallthru
    _
  // Predicated region
  $region42: #{_lambda_.1} parent=0 // pred_check
    _
  $region43: #{_lambda_.1} parent=0 // pred_check_branch
    %1429 = sbr.rel (0) target = $region45
  $region44: #{_lambda_.1} parent=0 // pred_region
    _
  $region45: #{_lambda_.1} parent=0 // pred_fallthru
    _

</llo_original>
